<compile_context>
chip_gen: v5e
topology: v5e:2x2
jax: 0.10.0
libtpu: 0.0.40
codegen_flags: <defaults>
</compile_context>

<pallas_src>
import math
import functools

import jax
import jax.numpy as jnp
from jax.experimental import pallas as pl
from jax.experimental.pallas import tpu as pltpu


# ----------------------------------------------------------------------------
# Kernel 1 (fused hot path): backbone 1x1-conv + ReLU -> conv1x1 (C_feat->d)
#  -> +bias -> +positional-encoding -> single K|V projection (N = 2d).
# Pixel-major layout: NCHW is reshaped in the wrapper to (B, HW, C_in) so each
# 1x1 conv is a (rows x C_in) @ (C_in x C_out) MXU matmul.  The (tile, C_feat)
# intermediate stays on-chip.
# ----------------------------------------------------------------------------
def _fused_feat_kv_kernel(x_ref, wb_ref, bb_ref, wc_ref, bc_ref, pe_ref,
                          wkv_ref, kv_ref):
    x = x_ref[0]                                             # (tm, Cin) bf16
    f = jnp.dot(x, wb_ref[...], preferred_element_type=jnp.float32)
    # ReLU + single bf16 cast: no f32 + bf16 copies of the (tm, Cf) tensor
    # live at the same time (dominant VMEM consumer at real C_feat).
    f = jnp.maximum(f + bb_ref[...], 0.0).astype(jnp.bfloat16)
    z = jnp.dot(f, wc_ref[...], preferred_element_type=jnp.float32)
    z = (z + bc_ref[...] + pe_ref[0]).astype(jnp.bfloat16)   # conv bias + PE
    # one N=2d matmul (wk|wv concatenated) fills the 256-wide MXU on v6e/v7x
    kv_ref[0] = jnp.dot(z, wkv_ref[...],
                        preferred_element_type=jnp.float32).astype(kv_ref.dtype)


def fused_feat_kv(xb, wb, bb, wc, bc, pe_b, wkv, *, hw_tile):
    B, HWp, Cin = xb.shape
    Cf = wb.shape[1]
    d = wc.shape[1]
    d2 = wkv.shape[1]

    # VMEM budget from the actual tile footprint (inputs/outputs counted
    # double-buffered) plus headroom; stays well under v7x's 64 MiB.
    per_step = (hw_tile * Cin * 2 + Cin * Cf * 2 + Cf * 4 + Cf * d * 2
                + d * 4 + d * 4 + d * d2 * 2 + hw_tile * d2 * 2)
    working = hw_tile * Cf * 2 + hw_tile * d * 4 + hw_tile * d2 * 4
    vmem_limit = int(min(max(2 * per_step + working + (4 << 20), 8 << 20),
                         56 << 20))

    flops = 2 * B * HWp * (Cin * Cf + Cf * d + d * d2)
    bytes_accessed = (B * HWp * Cin * 2 + B * HWp * d2 * 2
                      + (Cin * Cf + Cf * d + d * d2) * 2
                      + (Cf + d + B * d) * 4)

    return pl.pallas_call(
        _fused_feat_kv_kernel,
        out_shape=jax.ShapeDtypeStruct((B, HWp, d2), jnp.bfloat16),
        grid_spec=pltpu.PrefetchScalarGridSpec(
            num_scalar_prefetch=0,
            grid=(B, HWp // hw_tile),      # B outermost -> megacore sharding
            in_specs=[
                pl.BlockSpec((1, hw_tile, Cin), lambda b, t: (b, t, 0)),
                pl.BlockSpec((Cin, Cf), lambda b, t: (0, 0)),
                pl.BlockSpec((1, Cf), lambda b, t: (0, 0)),
                pl.BlockSpec((Cf, d), lambda b, t: (0, 0)),
                pl.BlockSpec((1, d), lambda b, t: (0, 0)),
                pl.BlockSpec((1, 1, d), lambda b, t: (b, 0, 0)),
                pl.BlockSpec((d, d2), lambda b, t: (0, 0)),
            ],
            out_specs=pl.BlockSpec((1, hw_tile, d2), lambda b, t: (b, t, 0)),
        ),
        compiler_params=pltpu.CompilerParams(
            dimension_semantics=("parallel", "parallel"),
            vmem_limit_bytes=vmem_limit),
        cost_estimate=pl.CostEstimate(flops=int(flops), transcendentals=0,
                                      bytes_accessed=int(bytes_accessed)),
    )(xb, wb, bb, wc, bc, pe_b, wkv)


# ----------------------------------------------------------------------------
# Kernel 2: fused transformer stand-in + prediction head, grid over B.
#   - Q projection (batch-invariant) recomputed in-kernel (cheaper than its
#     own pallas_call).
#   - Output projection Wo is pre-folded into the head weight in the wrapper,
#     so the epilogue is one matmul + masked sigmoid/softmax and one unmasked
#     lane-dense (NQ, 128) store.  No f32 t_out round trip to HBM.
# TODO(synk): the real `transformer` / `PredictionFFN` are externally injected
# modules whose definitions are not provided; a single deterministic
# cross-attention layer + linear(sigmoid)/linear(softmax) heads stand in.
# TODO(synk): for large HW (big images) switch this kernel to a KV-tiled
# online-softmax grid instead of materializing the full (NQ, HW) score matrix.
# ----------------------------------------------------------------------------
def _attn_head_kernel(qe_ref, wq_ref, kv_ref, wh_ref, bh_ref, o_ref, *,
                      scale, d, n_bbox, n_cls):
    # Q = query_embed @ Wq (scale folded into Q before the score matmul)
    q = jnp.dot(qe_ref[...], wq_ref[...], preferred_element_type=jnp.float32)
    q = (q * scale).astype(jnp.bfloat16)                      # (NQ, d)
    kv = kv_ref[0]                                            # (HW, 2d) bf16
    k = kv[:, :d]
    v = kv[:, d:]
    s = jax.lax.dot_general(q, k, (((1,), (1,)), ((), ())),
                            preferred_element_type=jnp.float32)
    s = s - jnp.max(s, axis=-1, keepdims=True)
    p = jnp.exp(s)
    p = p * pl.reciprocal(jnp.sum(p, axis=-1, keepdims=True), approx=True)
    attn = jnp.dot(p.astype(jnp.bfloat16), v,
                   preferred_element_type=jnp.float32)
    # Head with Wo folded in: wh = Wo @ [bbox_w | cls_w] (padded to 128 lanes)
    y = jnp.dot(attn.astype(jnp.bfloat16), wh_ref[...],
                preferred_element_type=jnp.float32) + bh_ref[...]
    rows, NP = y.shape
    lane = jax.lax.broadcasted_iota(jnp.int32, (rows, NP), 1)
    # bbox lanes: sigmoid = 1 / (1 + exp(-y))
    sig = pl.reciprocal(1.0 + jnp.exp(-y), approx=True)
    # class lanes: softmax restricted to lanes [n_bbox, n_bbox + n_cls)
    cls_mask = (lane >= n_bbox) & (lane < n_bbox + n_cls)
    ym = jnp.where(cls_mask, y, jnp.float32(-1e30))
    e = jnp.where(cls_mask,
                  jnp.exp(ym - jnp.max(ym, axis=-1, keepdims=True)), 0.0)
    soft = e * pl.reciprocal(jnp.sum(e, axis=-1, keepdims=True), approx=True)
    o_ref[0] = jnp.where(lane < n_bbox, sig, soft)


def attn_head(qe, wq, kv, wh, bh, *, n_bbox, n_cls):
    NQp, d = qe.shape
    B, HW, d2 = kv.shape
    NP = wh.shape[1]
    scale = 1.0 / math.sqrt(d)

    flops = 2 * B * (NQp * d * d + 2 * NQp * HW * d + NQp * d * NP)
    trans = B * NQp * (HW + 2 * NP)
    bytes_accessed = (B * HW * d2 * 2 + (NQp * d + d * d + d * NP) * 2
                      + NP * 4 + B * NQp * NP * 4)

    return pl.pallas_call(
        functools.partial(_attn_head_kernel, scale=scale, d=d,
                          n_bbox=n_bbox, n_cls=n_cls),
        out_shape=jax.ShapeDtypeStruct((B, NQp, NP), jnp.float32),
        grid_spec=pltpu.PrefetchScalarGridSpec(
            num_scalar_prefetch=0,
            grid=(B,),
            in_specs=[
                pl.BlockSpec((NQp, d), lambda b: (0, 0)),     # resident qe
                pl.BlockSpec((d, d), lambda b: (0, 0)),       # resident Wq
                pl.BlockSpec((1, HW, d2), lambda b: (b, 0, 0)),
                pl.BlockSpec((d, NP), lambda b: (0, 0)),      # fused head W
                pl.BlockSpec((1, NP), lambda b: (0, 0)),      # fused head b
            ],
            out_specs=pl.BlockSpec((1, NQp, NP), lambda b: (b, 0, 0)),
        ),
        compiler_params=pltpu.CompilerParams(
            dimension_semantics=("parallel",)),
        cost_estimate=pl.CostEstimate(flops=int(flops),
                                      transcendentals=int(trans),
                                      bytes_accessed=int(bytes_accessed)),
    )(qe, wq, kv, wh, bh)


# ----------------------------------------------------------------------------
# Positional-encoding table (deterministic constant buffer, plain JAX glue).
# ----------------------------------------------------------------------------
def positional_encoding_table(seq_len, d_model):
    position = jnp.arange(seq_len, dtype=jnp.float32)[:, None]
    div_term = jnp.exp(
        jnp.arange(0, d_model, 2, dtype=jnp.float32)
        * (-math.log(10000.0) / d_model))
    pe = jnp.zeros((seq_len, d_model), jnp.float32)
    pe = pe.at[:, 0::2].set(jnp.sin(position * div_term))
    pe = pe.at[:, 1::2].set(jnp.cos(position * div_term))
    return pe


def _pick_hw_tile(HW, Cin, Cf, d):
    if HW <= 512:
        return HW
    # Bound the per-tile working set (x + f(bf16) + z(f32) + KV out, inputs/
    # outputs double-buffered) to ~24 MiB so the tile also fits v7x's 64 MiB
    # VMEM at C_feat=4096; at smaller C_feat this naturally allows the
    # 1024-2048-row tiles that v5e/v6e's 128 MiB VMEM prefers.
    per_row = 2 * Cin * 2 + Cf * 2 + d * 4 + 2 * (2 * d) * 2 + (2 * d) * 4
    t = (24 << 20) // max(per_row, 1)
    t = max(512, min(2048, (t // 512) * 512))
    return t


# ----------------------------------------------------------------------------
# DETR forward
# ----------------------------------------------------------------------------
def detr_forward(x, params):
    B, Cin, H, W = x.shape
    HW = H * W
    Cf = params["backbone_w"].shape[1]
    d = params["conv_w"].shape[1]
    NQ = params["query_embed"].shape[0]
    NC = params["cls_w"].shape[1]
    bf = jnp.bfloat16

    # TODO(synk): the real backbone is an externally injected module; a
    # 1x1-conv + ReLU stand-in is fused into the main kernel below.

    hw_tile = _pick_hw_tile(HW, Cin, Cf, d)
    HWp = ((HW + hw_tile - 1) // hw_tile) * hw_tile
    xp = jnp.transpose(x, (0, 2, 3, 1)).reshape(B, HW, Cin)
    if HWp != HW:
        xp = jnp.pad(xp, ((0, 0), (0, HWp - HW), (0, 0)))
    xb = xp.astype(bf)

    # PositionalEncoding(d, H*W): reference applies it to (HW, B, d), so the
    # PE row index is the *batch* index broadcast over HW (reference quirk,
    # reproduced exactly).
    pe = positional_encoding_table(HW, d)
    pe_b = pe[:B].reshape(B, 1, d)
    # TODO(synk): nn.Dropout(0.1) is stochastic; identity (eval) semantics used.

    # wk|wv concatenated -> one N=2d matmul; K/V travel as one bf16 tensor.
    wkv = jnp.concatenate([params["wk"], params["wv"]], axis=1).astype(bf)
    KV = fused_feat_kv(
        xb,
        params["backbone_w"].astype(bf), params["backbone_b"].reshape(1, -1),
        params["conv_w"].astype(bf), params["conv_b"].reshape(1, -1),
        pe_b, wkv, hw_tile=hw_tile)
    if HWp != HW:
        KV = KV[:, :HW]      # padded rows must never be visible to attention

    # Fold Wo into the head: two back-to-back linears with no nonlinearity
    # are one matmul.  Pad to a 128-lane slab for an unmasked store.
    n_bbox = params["bbox_w"].shape[1]
    n_out = n_bbox + NC
    NP = ((n_out + 127) // 128) * 128
    w_head = jnp.concatenate([params["bbox_w"], params["cls_w"]], axis=1)
    w_fused = jnp.dot(params["wo"], w_head)
    w_fused = jnp.pad(w_fused, ((0, 0), (0, NP - n_out))).astype(bf)
    b_head = jnp.concatenate([params["bbox_b"], params["cls_b"]])
    b_head = jnp.pad(b_head, (0, NP - n_out)).reshape(1, NP)

    NQp = ((NQ + 7) // 8) * 8
    qe = params["query_embed"].astype(bf)
    if NQp != NQ:
        qe = jnp.pad(qe, ((0, NQp - NQ), (0, 0)))

    slab = attn_head(qe, params["wq"].astype(bf), KV, w_fused, b_head,
                     n_bbox=n_bbox, n_cls=NC)              # (B, NQp, NP) f32
    bbox_pred = slab[:, :NQ, :n_bbox]
    cls_pred = slab[:, :NQ, n_bbox:n_out]
    return bbox_pred, cls_pred


# ----------------------------------------------------------------------------
# Deterministic parameter construction (scaled-down: 4096->128, d_model
# 256->128, n_queries 100->16) and driver.
# ----------------------------------------------------------------------------
def make_params(key, c_in, c_feat, d_model, n_queries, n_classes):
    ks = jax.random.split(key, 12)
    s = 0.02
    return {
        "backbone_w": s * jax.random.normal(ks[0], (c_in, c_feat), jnp.float32),
        "backbone_b": s * jax.random.normal(ks[1], (c_feat,), jnp.float32),
        "conv_w": s * jax.random.normal(ks[2], (c_feat, d_model), jnp.float32),
        "conv_b": s * jax.random.normal(ks[3], (d_model,), jnp.float32),
        "query_embed": jax.random.normal(ks[4], (n_queries, d_model), jnp.float32),
        "wq": s * jax.random.normal(ks[5], (d_model, d_model), jnp.float32),
        "wk": s * jax.random.normal(ks[6], (d_model, d_model), jnp.float32),
        "wv": s * jax.random.normal(ks[7], (d_model, d_model), jnp.float32),
        "wo": s * jax.random.normal(ks[8], (d_model, d_model), jnp.float32),
        "bbox_w": s * jax.random.normal(ks[9], (d_model, 4), jnp.float32),
        "bbox_b": jnp.zeros((4,), jnp.float32),
        "cls_w": s * jax.random.normal(ks[10], (d_model, n_classes), jnp.float32),
        "cls_b": jnp.zeros((n_classes,), jnp.float32),
    }


if __name__ == "__main__":
    B, C_IN, H, W = 2, 4, 8, 8
    C_FEAT = 128      # stand-in for 4096
    D_MODEL = 128     # stand-in for 256
    N_QUERIES = 16    # stand-in for 100
    N_CLASSES = 8

    key = jax.random.PRNGKey(0)
    k_x, k_p = jax.random.split(key)
    x = jax.random.normal(k_x, (B, C_IN, H, W), jnp.float32)
    params = make_params(k_p, C_IN, C_FEAT, D_MODEL, N_QUERIES, N_CLASSES)

    bbox_pred, cls_pred = jax.jit(detr_forward)(x, params)
    jax.block_until_ready((bbox_pred, cls_pred))

    assert bbox_pred.shape == (B, N_QUERIES, 4)
    assert cls_pred.shape == (B, N_QUERIES, N_CLASSES)
    assert bool(jnp.all(jnp.isfinite(bbox_pred)))
    assert bool(jnp.all(jnp.isfinite(cls_pred)))
    print("KERNEL_OK")
</pallas_src>

<mosaic_0001>
module attributes {stable_mosaic.version = 11 : i64} {
  func.func @_fused_feat_kv_kernel(%arg0: i32, %arg1: i32, %arg2: memref<1x64x4xbf16, #tpu.memory_space<vmem>>, %arg3: memref<4x128xbf16, #tpu.memory_space<vmem>>, %arg4: memref<1x128xf32, #tpu.memory_space<vmem>>, %arg5: memref<128x128xbf16, #tpu.memory_space<vmem>>, %arg6: memref<1x128xf32, #tpu.memory_space<vmem>>, %arg7: memref<1x1x128xf32, #tpu.memory_space<vmem>>, %arg8: memref<128x256xbf16, #tpu.memory_space<vmem>>, %arg9: memref<1x64x256xbf16, #tpu.memory_space<vmem>>) attributes {dimension_semantics = [#tpu.dimension_semantics<parallel>, #tpu.dimension_semantics<parallel>], iteration_bounds = array<i64: 2, 1>, scalar_prefetch = 0 : i64, scratch_operands = 0 : i64, tpu.core_type = #tpu.core_type<tc>, window_params = [{transform_indices = @transform_0, window_bounds = array<i64: 1, 64, 4>}, {pipeline_mode = #tpu.pipeline_mode<synchronous>, transform_indices = @transform_1, window_bounds = array<i64: 4, 128>}, {pipeline_mode = #tpu.pipeline_mode<synchronous>, transform_indices = @transform_2, window_bounds = array<i64: 1, 128>}, {pipeline_mode = #tpu.pipeline_mode<synchronous>, transform_indices = @transform_3, window_bounds = array<i64: 128, 128>}, {pipeline_mode = #tpu.pipeline_mode<synchronous>, transform_indices = @transform_4, window_bounds = array<i64: 1, 128>}, {transform_indices = @transform_5, window_bounds = array<i64: 1, 1, 128>}, {pipeline_mode = #tpu.pipeline_mode<synchronous>, transform_indices = @transform_6, window_bounds = array<i64: 128, 256>}, {transform_indices = @transform_7, window_bounds = array<i64: 1, 64, 256>}]} {
    %c0 = arith.constant 0 : index
    %c0_0 = arith.constant 0 : index
    %c0_1 = arith.constant 0 : index
    %0 = vector.load %arg2[%c0, %c0_0, %c0_1] : memref<1x64x4xbf16, #tpu.memory_space<vmem>>, vector<1x64x4xbf16>
    %1 = vector.shape_cast %0 : vector<1x64x4xbf16> to vector<64x4xbf16>
    %c0_2 = arith.constant 0 : index
    %c0_3 = arith.constant 0 : index
    %2 = vector.load %arg3[%c0_2, %c0_3] : memref<4x128xbf16, #tpu.memory_space<vmem>>, vector<4x128xbf16>
    %cst = arith.constant dense<0.000000e+00> : vector<64x128xf32>
    %3 = tpu.matmul %1, %2, %cst {dimension_numbers = #tpu.dot_dimension_numbers<[1], [0], [0], [1], [0, 0, 1, 1], [], []>} : vector<64x4xbf16>, vector<4x128xbf16>, vector<64x128xf32> -> vector<64x128xf32>
    %c0_4 = arith.constant 0 : index
    %c0_5 = arith.constant 0 : index
    %4 = vector.load %arg4[%c0_4, %c0_5] : memref<1x128xf32, #tpu.memory_space<vmem>>, vector<1x128xf32>
    %5 = vector.broadcast %4 : vector<1x128xf32> to vector<64x128xf32>
    %6 = arith.addf %3, %5 : vector<64x128xf32>
    %cst_6 = arith.constant 0.000000e+00 : f32
    %7 = vector.broadcast %cst_6 : f32 to vector<64x128xf32>
    %8 = arith.maximumf %6, %7 : vector<64x128xf32>
    %9 = arith.truncf %8 : vector<64x128xf32> to vector<64x128xbf16>
    %c0_7 = arith.constant 0 : index
    %c0_8 = arith.constant 0 : index
    %10 = vector.load %arg5[%c0_7, %c0_8] : memref<128x128xbf16, #tpu.memory_space<vmem>>, vector<128x128xbf16>
    %cst_9 = arith.constant dense<0.000000e+00> : vector<64x128xf32>
    %11 = tpu.matmul %9, %10, %cst_9 {dimension_numbers = #tpu.dot_dimension_numbers<[1], [0], [0], [1], [0, 0, 1, 1], [], []>} : vector<64x128xbf16>, vector<128x128xbf16>, vector<64x128xf32> -> vector<64x128xf32>
    %c0_10 = arith.constant 0 : index
    %c0_11 = arith.constant 0 : index
    %12 = vector.load %arg6[%c0_10, %c0_11] : memref<1x128xf32, #tpu.memory_space<vmem>>, vector<1x128xf32>
    %13 = vector.broadcast %12 : vector<1x128xf32> to vector<64x128xf32>
    %14 = arith.addf %11, %13 : vector<64x128xf32>
    %c0_12 = arith.constant 0 : index
    %c0_13 = arith.constant 0 : index
    %c0_14 = arith.constant 0 : index
    %15 = vector.load %arg7[%c0_12, %c0_13, %c0_14] : memref<1x1x128xf32, #tpu.memory_space<vmem>>, vector<1x1x128xf32>
    %16 = vector.shape_cast %15 : vector<1x1x128xf32> to vector<1x128xf32>
    %17 = vector.broadcast %16 : vector<1x128xf32> to vector<64x128xf32>
    %18 = arith.addf %14, %17 : vector<64x128xf32>
    %19 = arith.truncf %18 : vector<64x128xf32> to vector<64x128xbf16>
    %c0_15 = arith.constant 0 : index
    %c0_16 = arith.constant 0 : index
    %20 = vector.load %arg8[%c0_15, %c0_16] : memref<128x256xbf16, #tpu.memory_space<vmem>>, vector<128x256xbf16>
    %cst_17 = arith.constant dense<0.000000e+00> : vector<64x256xf32>
    %21 = tpu.matmul %19, %20, %cst_17 {dimension_numbers = #tpu.dot_dimension_numbers<[1], [0], [0], [1], [0, 0, 1, 1], [], []>} : vector<64x128xbf16>, vector<128x256xbf16>, vector<64x256xf32> -> vector<64x256xf32>
    %22 = arith.truncf %21 : vector<64x256xf32> to vector<64x256xbf16>
    %c0_18 = arith.constant 0 : index
    %c0_19 = arith.constant 0 : index
    %c0_20 = arith.constant 0 : index
    %23 = vector.load %arg9[%c0_18, %c0_19, %c0_20] : memref<1x64x256xbf16, #tpu.memory_space<vmem>>, vector<1x64x256xbf16>
    %24 = vector.shape_cast %23 : vector<1x64x256xbf16> to vector<64x256xbf16>
    %25 = vector.shape_cast %22 : vector<64x256xbf16> to vector<1x64x256xbf16>
    tpu.vector_store %arg9[%c0_18, %c0_19, %c0_20], %25 {strides = array<i32>} : memref<1x64x256xbf16, #tpu.memory_space<vmem>>, vector<1x64x256xbf16>,
    return
  }
  func.func @transform_0(%arg0: i32, %arg1: i32) -> (i32, i32, i32) {
    %c0_i32 = arith.constant 0 : i32
    %c0_i32_0 = arith.constant 0 : i32
    return %arg0, %arg1, %c0_i32 : i32, i32, i32
  }
  func.func @transform_1(%arg0: i32, %arg1: i32) -> (i32, i32) {
    %c0_i32 = arith.constant 0 : i32
    %c0_i32_0 = arith.constant 0 : i32
    %c0_i32_1 = arith.constant 0 : i32
    return %c0_i32, %c0_i32_0 : i32, i32
  }
  func.func @transform_2(%arg0: i32, %arg1: i32) -> (i32, i32) {
    %c0_i32 = arith.constant 0 : i32
    %c0_i32_0 = arith.constant 0 : i32
    %c0_i32_1 = arith.constant 0 : i32
    return %c0_i32, %c0_i32_0 : i32, i32
  }
  func.func @transform_3(%arg0: i32, %arg1: i32) -> (i32, i32) {
    %c0_i32 = arith.constant 0 : i32
    %c0_i32_0 = arith.constant 0 : i32
    %c0_i32_1 = arith.constant 0 : i32
    return %c0_i32, %c0_i32_0 : i32, i32
  }
  func.func @transform_4(%arg0: i32, %arg1: i32) -> (i32, i32) {
    %c0_i32 = arith.constant 0 : i32
    %c0_i32_0 = arith.constant 0 : i32
    %c0_i32_1 = arith.constant 0 : i32
    return %c0_i32, %c0_i32_0 : i32, i32
  }
  func.func @transform_5(%arg0: i32, %arg1: i32) -> (i32, i32, i32) {
    %c0_i32 = arith.constant 0 : i32
    %c0_i32_0 = arith.constant 0 : i32
    %c0_i32_1 = arith.constant 0 : i32
    return %arg0, %c0_i32, %c0_i32_0 : i32, i32, i32
  }
  func.func @transform_6(%arg0: i32, %arg1: i32) -> (i32, i32) {
    %c0_i32 = arith.constant 0 : i32
    %c0_i32_0 = arith.constant 0 : i32
    %c0_i32_1 = arith.constant 0 : i32
    return %c0_i32, %c0_i32_0 : i32, i32
  }
  func.func @transform_7(%arg0: i32, %arg1: i32) -> (i32, i32, i32) {
    %c0_i32 = arith.constant 0 : i32
    %c0_i32_0 = arith.constant 0 : i32
    return %arg0, %arg1, %c0_i32 : i32, i32, i32
  }
}

module attributes {stable_mosaic.version = 11 : i64} {
  func.func @_attn_head_kernel(%arg0: i32, %arg1: memref<16x128xbf16, #tpu.memory_space<vmem>>, %arg2: memref<128x128xbf16, #tpu.memory_space<vmem>>, %arg3: memref<1x64x256xbf16, #tpu.memory_space<vmem>>, %arg4: memref<128x128xbf16, #tpu.memory_space<vmem>>, %arg5: memref<1x128xf32, #tpu.memory_space<vmem>>, %arg6: memref<1x16x128xf32, #tpu.memory_space<vmem>>) attributes {dimension_semantics = [#tpu.dimension_semantics<parallel>], iteration_bounds = array<i64: 2>, scalar_prefetch = 0 : i64, scratch_operands = 0 : i64, tpu.core_type = #tpu.core_type<tc>, window_params = [{pipeline_mode = #tpu.pipeline_mode<synchronous>, transform_indices = @transform_0, window_bounds = array<i64: 16, 128>}, {pipeline_mode = #tpu.pipeline_mode<synchronous>, transform_indices = @transform_1, window_bounds = array<i64: 128, 128>}, {transform_indices = @transform_2, window_bounds = array<i64: 1, 64, 256>}, {pipeline_mode = #tpu.pipeline_mode<synchronous>, transform_indices = @transform_3, window_bounds = array<i64: 128, 128>}, {pipeline_mode = #tpu.pipeline_mode<synchronous>, transform_indices = @transform_4, window_bounds = array<i64: 1, 128>}, {transform_indices = @transform_5, window_bounds = array<i64: 1, 16, 128>}]} {
    %c0 = arith.constant 0 : index
    %c0_0 = arith.constant 0 : index
    %0 = vector.load %arg1[%c0, %c0_0] : memref<16x128xbf16, #tpu.memory_space<vmem>>, vector<16x128xbf16>
    %c0_1 = arith.constant 0 : index
    %c0_2 = arith.constant 0 : index
    %1 = vector.load %arg2[%c0_1, %c0_2] : memref<128x128xbf16, #tpu.memory_space<vmem>>, vector<128x128xbf16>
    %cst = arith.constant dense<0.000000e+00> : vector<16x128xf32>
    %2 = tpu.matmul %0, %1, %cst {dimension_numbers = #tpu.dot_dimension_numbers<[1], [0], [0], [1], [0, 0, 1, 1], [], []>} : vector<16x128xbf16>, vector<128x128xbf16>, vector<16x128xf32> -> vector<16x128xf32>
    %cst_3 = arith.constant 0.0883883461 : f32
    %3 = vector.broadcast %cst_3 : f32 to vector<16x128xf32>
    %4 = arith.mulf %2, %3 : vector<16x128xf32>
    %5 = arith.truncf %4 : vector<16x128xf32> to vector<16x128xbf16>
    %c0_4 = arith.constant 0 : index
    %c0_5 = arith.constant 0 : index
    %c0_6 = arith.constant 0 : index
    %6 = vector.load %arg3[%c0_4, %c0_5, %c0_6] : memref<1x64x256xbf16, #tpu.memory_space<vmem>>, vector<1x64x256xbf16>
    %7 = vector.shape_cast %6 : vector<1x64x256xbf16> to vector<64x256xbf16>
    %8 = vector.extract_strided_slice %7 {offsets = [0, 0], sizes = [64, 128], strides = [1, 1]} : vector<64x256xbf16> to vector<64x128xbf16>
    %9 = vector.extract_strided_slice %7 {offsets = [0, 128], sizes = [64, 128], strides = [1, 1]} : vector<64x256xbf16> to vector<64x128xbf16>
    %cst_7 = arith.constant dense<0.000000e+00> : vector<16x64xf32>
    %10 = tpu.matmul %5, %8, %cst_7 {dimension_numbers = #tpu.dot_dimension_numbers<[1], [1], [0], [0], [0, 0, 1, 0], [], []>} : vector<16x128xbf16>, vector<64x128xbf16>, vector<16x64xf32> -> vector<16x64xf32>
    %cst_8 = arith.constant dense<0xFF800000> : vector<16xf32>
    %11 = vector.multi_reduction <maximumf>, %10, %cst_8 [1] : vector<16x64xf32> to vector<16xf32>
    %12 = vector.shape_cast %11 : vector<16xf32> to vector<16x1xf32>
    %13 = vector.broadcast %12 : vector<16x1xf32> to vector<16x64xf32>
    %14 = arith.subf %10, %13 : vector<16x64xf32>
    %15 = math.exp %14 : vector<16x64xf32>
    %cst_9 = arith.constant dense<0.000000e+00> : vector<16xf32>
    %16 = vector.multi_reduction <add>, %15, %cst_9 [1] : vector<16x64xf32> to vector<16xf32>
    %17 = vector.shape_cast %16 : vector<16xf32> to vector<16x1xf32>
    %18 = tpu.reciprocal %17 {approx = true} : vector<16x1xf32> -> vector<16x1xf32>
    %19 = vector.broadcast %18 : vector<16x1xf32> to vector<16x64xf32>
    %20 = arith.mulf %15, %19 : vector<16x64xf32>
    %21 = arith.truncf %20 : vector<16x64xf32> to vector<16x64xbf16>
    %cst_10 = arith.constant dense<0.000000e+00> : vector<16x128xf32>
    %22 = tpu.matmul %21, %9, %cst_10 {dimension_numbers = #tpu.dot_dimension_numbers<[1], [0], [0], [1], [0, 0, 1, 1], [], []>} : vector<16x64xbf16>, vector<64x128xbf16>, vector<16x128xf32> -> vector<16x128xf32>
    %23 = arith.truncf %22 : vector<16x128xf32> to vector<16x128xbf16>
    %c0_11 = arith.constant 0 : index
    %c0_12 = arith.constant 0 : index
    %24 = vector.load %arg4[%c0_11, %c0_12] : memref<128x128xbf16, #tpu.memory_space<vmem>>, vector<128x128xbf16>
    %cst_13 = arith.constant dense<0.000000e+00> : vector<16x128xf32>
    %25 = tpu.matmul %23, %24, %cst_13 {dimension_numbers = #tpu.dot_dimension_numbers<[1], [0], [0], [1], [0, 0, 1, 1], [], []>} : vector<16x128xbf16>, vector<128x128xbf16>, vector<16x128xf32> -> vector<16x128xf32>
    %c0_14 = arith.constant 0 : index
    %c0_15 = arith.constant 0 : index
    %26 = vector.load %arg5[%c0_14, %c0_15] : memref<1x128xf32, #tpu.memory_space<vmem>>, vector<1x128xf32>
    %27 = vector.broadcast %26 : vector<1x128xf32> to vector<16x128xf32>
    %28 = arith.addf %25, %27 : vector<16x128xf32>
    %29 = tpu.iota {dimensions = array<i32: 1>} : vector<16x128xi32>
    %cst_16 = arith.constant 0.000000e+00 : f32
    %30 = vector.broadcast %cst_16 : f32 to vector<16x128xf32>
    %31 = arith.subf %30, %28 : vector<16x128xf32>
    %32 = math.exp %31 : vector<16x128xf32>
    %cst_17 = arith.constant 1.000000e+00 : f32
    %33 = vector.broadcast %cst_17 : f32 to vector<16x128xf32>
    %34 = arith.addf %33, %32 : vector<16x128xf32>
    %35 = tpu.reciprocal %34 {approx = true} : vector<16x128xf32> -> vector<16x128xf32>
    %c4_i32 = arith.constant 4 : i32
    %36 = vector.broadcast %c4_i32 : i32 to vector<16x128xi32>
    %37 = arith.cmpi sge, %29, %36 : vector<16x128xi32>
    %c12_i32 = arith.constant 12 : i32
    %38 = vector.broadcast %c12_i32 : i32 to vector<16x128xi32>
    %39 = arith.cmpi slt, %29, %38 : vector<16x128xi32>
    %40 = arith.andi %37, %39 : vector<16x128xi1>
    %cst_18 = arith.constant -1.000000e+30 : f32
    %41 = vector.broadcast %cst_18 : f32 to vector<16x128xf32>
    %42 = arith.select %40, %28, %41 : vector<16x128xi1>, vector<16x128xf32>
    %cst_19 = arith.constant dense<0xFF800000> : vector<16xf32>
    %43 = vector.multi_reduction <maximumf>, %42, %cst_19 [1] : vector<16x128xf32> to vector<16xf32>
    %44 = vector.shape_cast %43 : vector<16xf32> to vector<16x1xf32>
    %45 = vector.broadcast %44 : vector<16x1xf32> to vector<16x128xf32>
    %46 = arith.subf %42, %45 : vector<16x128xf32>
    %47 = math.exp %46 : vector<16x128xf32>
    %cst_20 = arith.constant 0.000000e+00 : f32
    %48 = vector.broadcast %cst_20 : f32 to vector<16x128xf32>
    %49 = arith.select %40, %47, %48 : vector<16x128xi1>, vector<16x128xf32>
    %cst_21 = arith.constant dense<0.000000e+00> : vector<16xf32>
    %50 = vector.multi_reduction <add>, %49, %cst_21 [1] : vector<16x128xf32> to vector<16xf32>
    %51 = vector.shape_cast %50 : vector<16xf32> to vector<16x1xf32>
    %52 = tpu.reciprocal %51 {approx = true} : vector<16x1xf32> -> vector<16x1xf32>
    %53 = vector.broadcast %52 : vector<16x1xf32> to vector<16x128xf32>
    %54 = arith.mulf %49, %53 : vector<16x128xf32>
    %c4_i32_22 = arith.constant 4 : i32
    %55 = vector.broadcast %c4_i32_22 : i32 to vector<16x128xi32>
    %56 = arith.cmpi slt, %29, %55 : vector<16x128xi32>
    %57 = arith.select %56, %35, %54 : vector<16x128xi1>, vector<16x128xf32>
    %c0_23 = arith.constant 0 : index
    %c0_24 = arith.constant 0 : index
    %c0_25 = arith.constant 0 : index
    %58 = vector.load %arg6[%c0_23, %c0_24, %c0_25] : memref<1x16x128xf32, #tpu.memory_space<vmem>>, vector<1x16x128xf32>
    %59 = vector.shape_cast %58 : vector<1x16x128xf32> to vector<16x128xf32>
    %60 = vector.shape_cast %57 : vector<16x128xf32> to vector<1x16x128xf32>
    tpu.vector_store %arg6[%c0_23, %c0_24, %c0_25], %60 {strides = array<i32>} : memref<1x16x128xf32, #tpu.memory_space<vmem>>, vector<1x16x128xf32>,
    return
  }
  func.func @transform_0(%arg0: i32) -> (i32, i32) {
    %c0_i32 = arith.constant 0 : i32
    %c0_i32_0 = arith.constant 0 : i32
    %c0_i32_1 = arith.constant 0 : i32
    return %c0_i32, %c0_i32_0 : i32, i32
  }
  func.func @transform_1(%arg0: i32) -> (i32, i32) {
    %c0_i32 = arith.constant 0 : i32
    %c0_i32_0 = arith.constant 0 : i32
    %c0_i32_1 = arith.constant 0 : i32
    return %c0_i32, %c0_i32_0 : i32, i32
  }
  func.func @transform_2(%arg0: i32) -> (i32, i32, i32) {
    %c0_i32 = arith.constant 0 : i32
    %c0_i32_0 = arith.constant 0 : i32
    %c0_i32_1 = arith.constant 0 : i32
    return %arg0, %c0_i32, %c0_i32_0 : i32, i32, i32
  }
  func.func @transform_3(%arg0: i32) -> (i32, i32) {
    %c0_i32 = arith.constant 0 : i32
    %c0_i32_0 = arith.constant 0 : i32
    %c0_i32_1 = arith.constant 0 : i32
    return %c0_i32, %c0_i32_0 : i32, i32
  }
  func.func @transform_4(%arg0: i32) -> (i32, i32) {
    %c0_i32 = arith.constant 0 : i32
    %c0_i32_0 = arith.constant 0 : i32
    %c0_i32_1 = arith.constant 0 : i32
    return %c0_i32, %c0_i32_0 : i32, i32
  }
  func.func @transform_5(%arg0: i32) -> (i32, i32, i32) {
    %c0_i32 = arith.constant 0 : i32
    %c0_i32_0 = arith.constant 0 : i32
    %c0_i32_1 = arith.constant 0 : i32
    return %arg0, %c0_i32, %c0_i32_0 : i32, i32, i32
  }
}

</mosaic_0001>

<llo_original>
// kernel: detr_forward.2
$region0: #{detr_forward.2}
  #allocation0 [shape = 'u32[]', space=smem, size = 0x4, offset = 0x4, fixed_abs, tag = 'smem constant byte address 0x4 - core index']
  #allocation1 [shape = 'u32[72,128]{1,0:T(1,128)}', space=vmem, size = 0x9000, scoped, tag = 'internal scratch']
  %s0 = inlined_call_operand.vmem [shape: bf16[2,64,4], index: 0, kind: input, shape index: {}]
  %s1 = inlined_call_operand.vmem [shape: bf16[4,128], index: 1, kind: input, shape index: {}]
  %s2 = inlined_call_operand.vmem [shape: f32[1,128], index: 2, kind: input, shape index: {}]
  %s3 = inlined_call_operand.vmem [shape: bf16[128,128], index: 3, kind: input, shape index: {}]
  %s4 = inlined_call_operand.vmem [shape: f32[1,128], index: 4, kind: input, shape index: {}]
  %s5 = inlined_call_operand.vmem [shape: f32[2,1,128], index: 5, kind: input, shape index: {}]
  %s6 = inlined_call_operand.vmem [shape: bf16[128,256], index: 6, kind: input, shape index: {}]
  %s7 = inlined_call_operand.vmem [shape: bf16[2,64,256], index: 7, kind: output, shape index: {}]
  %s8 = sld [smem:[#allocation0]]
  $region61: #{detr_forward.2} parent=0
    _
  %s10 = ssub.s32 1, %s8
  %s11 = scalar_select 0, %s10, %s8
  loop: start=0, step=1, limit=4
  $region2: #{detr_forward.2} parent=0 // loop_pre_header
    _
  $region3: #{detr_forward.2} parent=0 // loop_header
    %s13 = sphi 0, %s17
    %p14 = scmp.ge.s32.totalorder %s13, 4
    %s20 = sphi 0, %s32
    %s21 = sphi 0, %s28
    %s22 = sphi 0, %s20
    %s23 = sphi 0, %s21
    %s24 = sphi 0, %s22
    %s25 = sphi 0, %s23
    %s37 = sphi 0, %s39
    %s40 = sphi 0, %s37
    %s41 = sphi 0, %s40
    %s57 = sphi 0, %s41
    %s61 = sphi 0, %s61
    %s63 = sphi 0, %s61
    %s64 = sphi 0, %s63
    %s78 = sphi 0, %s64
    %s82 = sphi 0, %s82
    %s84 = sphi 0, %s82
    %s85 = sphi 0, %s84
    %s99 = sphi 0, %s85
    %s103 = sphi 0, %s103
    %s105 = sphi 0, %s103
    %s106 = sphi 0, %s105
    %s120 = sphi 0, %s106
    %s124 = sphi 0, %s124
    %s126 = sphi 0, %s124
    %s127 = sphi 0, %s126
    %s141 = sphi 0, %s127
    %s147 = sphi 0, %s149
    %s150 = sphi 0, %s147
    %s151 = sphi 0, %s150
    %s167 = sphi 0, %s151
    %s171 = sphi 0, %s171
    %s173 = sphi 0, %s171
    %s174 = sphi 0, %s173
    %s188 = sphi 0, %s174
    %s196 = sphi 0, %s198
    %s199 = sphi 0, %s196
    %s200 = sphi 0, %s199
    %s216 = sphi 0, %s200
  $region4: #{detr_forward.2} parent=0 // loop_header_branch
    %16 = sbr.rel (%p14) target = $region8
  $region5: #{detr_forward.2} parent=0 // loop_body
    %s18 = ssub.s32 %s13, 1
    %s19 = ssub.s32 %s13, 2
    %s26 = sadd.s32 1, %s21
    %p27 = scmp.ge.s32.totalorder %s26, 1
    %s28 = scalar_select %p27, 0, %s26
    %s29 = sadd.s32 1, %s20
    %s30 = scalar_select %p27, %s29, %s20
    %p31 = scmp.ge.s32.totalorder %s30, 2
    %s32 = scalar_select %p31, 0, %s30
    %s33 = ssub.s32 %s20, %s32
    %s34 = ssub.s32 %s21, %s28
    %s35 = sor.u32 %s33, %s34
    %p36 = scmp.eq.s32.totalorder %s35, 0
    %s38 = sadd.s32 %s37, 1
    %s39 = scalar_select %p36, %s37, %s38
    %p42 = pneg %p36
    %p43 = scmp.eq.s32.totalorder %s13, 1
    %p44 = por %p42, %p43
    %p45 = scmp.ne.s32.totalorder %s37, %s40
    %p46 = scmp.eq.s32.totalorder %s13, 0
    %p47 = por %p45, %p46
    %p48 = scmp.ne.s32.totalorder %s37, %s40
    %p49 = scmp.eq.s32.totalorder %s18, 1
    %p50 = por %p48, %p49
    %p51 = scmp.ne.s32.totalorder %s40, %s41
    %p52 = scmp.eq.s32.totalorder %s18, 0
    %p53 = por %p51, %p52
    %p54 = scmp.ne.s32.totalorder %s40, %s41
    %p55 = scmp.eq.s32.totalorder %s19, 1
    %p56 = por %p54, %p55
    %p58 = scmp.ne.s32.totalorder %s41, %s57
    %p59 = scmp.eq.s32.totalorder %s19, 0
    %p60 = por %p58, %p59
    %s62 = sadd.s32 %s61, 1
    %p65 = scmp.eq.s32.totalorder %s13, 1
    %p66 = scmp.ne.s32.totalorder %s61, %s63
    %p67 = scmp.eq.s32.totalorder %s13, 0
    %p68 = por %p66, %p67
    %p69 = scmp.ne.s32.totalorder %s61, %s63
    %p70 = scmp.eq.s32.totalorder %s18, 1
    %p71 = por %p69, %p70
    %p72 = scmp.ne.s32.totalorder %s63, %s64
    %p73 = scmp.eq.s32.totalorder %s18, 0
    %p74 = por %p72, %p73
    %p75 = scmp.ne.s32.totalorder %s63, %s64
    %p76 = scmp.eq.s32.totalorder %s19, 1
    %p77 = por %p75, %p76
    %p79 = scmp.ne.s32.totalorder %s64, %s78
    %p80 = scmp.eq.s32.totalorder %s19, 0
    %p81 = por %p79, %p80
    %s83 = sadd.s32 %s82, 1
    %p86 = scmp.eq.s32.totalorder %s13, 1
    %p87 = scmp.ne.s32.totalorder %s82, %s84
    %p88 = scmp.eq.s32.totalorder %s13, 0
    %p89 = por %p87, %p88
    %p90 = scmp.ne.s32.totalorder %s82, %s84
    %p91 = scmp.eq.s32.totalorder %s18, 1
    %p92 = por %p90, %p91
    %p93 = scmp.ne.s32.totalorder %s84, %s85
    %p94 = scmp.eq.s32.totalorder %s18, 0
    %p95 = por %p93, %p94
    %p96 = scmp.ne.s32.totalorder %s84, %s85
    %p97 = scmp.eq.s32.totalorder %s19, 1
    %p98 = por %p96, %p97
    %p100 = scmp.ne.s32.totalorder %s85, %s99
    %p101 = scmp.eq.s32.totalorder %s19, 0
    %p102 = por %p100, %p101
    %s104 = sadd.s32 %s103, 1
    %p107 = scmp.eq.s32.totalorder %s13, 1
    %p108 = scmp.ne.s32.totalorder %s103, %s105
    %p109 = scmp.eq.s32.totalorder %s13, 0
    %p110 = por %p108, %p109
    %p111 = scmp.ne.s32.totalorder %s103, %s105
    %p112 = scmp.eq.s32.totalorder %s18, 1
    %p113 = por %p111, %p112
    %p114 = scmp.ne.s32.totalorder %s105, %s106
    %p115 = scmp.eq.s32.totalorder %s18, 0
    %p116 = por %p114, %p115
    %p117 = scmp.ne.s32.totalorder %s105, %s106
    %p118 = scmp.eq.s32.totalorder %s19, 1
    %p119 = por %p117, %p118
    %p121 = scmp.ne.s32.totalorder %s106, %s120
    %p122 = scmp.eq.s32.totalorder %s19, 0
    %p123 = por %p121, %p122
    %s125 = sadd.s32 %s124, 1
    %p128 = scmp.eq.s32.totalorder %s13, 1
    %p129 = scmp.ne.s32.totalorder %s124, %s126
    %p130 = scmp.eq.s32.totalorder %s13, 0
    %p131 = por %p129, %p130
    %p132 = scmp.ne.s32.totalorder %s124, %s126
    %p133 = scmp.eq.s32.totalorder %s18, 1
    %p134 = por %p132, %p133
    %p135 = scmp.ne.s32.totalorder %s126, %s127
    %p136 = scmp.eq.s32.totalorder %s18, 0
    %p137 = por %p135, %p136
    %p138 = scmp.ne.s32.totalorder %s126, %s127
    %p139 = scmp.eq.s32.totalorder %s19, 1
    %p140 = por %p138, %p139
    %p142 = scmp.ne.s32.totalorder %s127, %s141
    %p143 = scmp.eq.s32.totalorder %s19, 0
    %p144 = por %p142, %p143
    %s145 = ssub.s32 %s20, %s32
    %p146 = scmp.eq.s32.totalorder %s145, 0
    %s148 = sadd.s32 %s147, 1
    %s149 = scalar_select %p146, %s147, %s148
    %p152 = pneg %p146
    %p153 = scmp.eq.s32.totalorder %s13, 1
    %p154 = por %p152, %p153
    %p155 = scmp.ne.s32.totalorder %s147, %s150
    %p156 = scmp.eq.s32.totalorder %s13, 0
    %p157 = por %p155, %p156
    %p158 = scmp.ne.s32.totalorder %s147, %s150
    %p159 = scmp.eq.s32.totalorder %s18, 1
    %p160 = por %p158, %p159
    %p161 = scmp.ne.s32.totalorder %s150, %s151
    %p162 = scmp.eq.s32.totalorder %s18, 0
    %p163 = por %p161, %p162
    %p164 = scmp.ne.s32.totalorder %s150, %s151
    %p165 = scmp.eq.s32.totalorder %s19, 1
    %p166 = por %p164, %p165
    %p168 = scmp.ne.s32.totalorder %s151, %s167
    %p169 = scmp.eq.s32.totalorder %s19, 0
    %p170 = por %p168, %p169
    %s172 = sadd.s32 %s171, 1
    %p175 = scmp.eq.s32.totalorder %s13, 1
    %p176 = scmp.ne.s32.totalorder %s171, %s173
    %p177 = scmp.eq.s32.totalorder %s13, 0
    %p178 = por %p176, %p177
    %p179 = scmp.ne.s32.totalorder %s171, %s173
    %p180 = scmp.eq.s32.totalorder %s18, 1
    %p181 = por %p179, %p180
    %p182 = scmp.ne.s32.totalorder %s173, %s174
    %p183 = scmp.eq.s32.totalorder %s18, 0
    %p184 = por %p182, %p183
    %p185 = scmp.ne.s32.totalorder %s173, %s174
    %p186 = scmp.eq.s32.totalorder %s19, 1
    %p187 = por %p185, %p186
    %p189 = scmp.ne.s32.totalorder %s174, %s188
    %p190 = scmp.eq.s32.totalorder %s19, 0
    %p191 = por %p189, %p190
    %s192 = ssub.s32 %s20, %s32
    %s193 = ssub.s32 %s21, %s28
    %s194 = sor.u32 %s192, %s193
    %p195 = scmp.eq.s32.totalorder %s194, 0
    %s197 = sadd.s32 %s196, 1
    %s198 = scalar_select %p195, %s196, %s197
    %p201 = pneg %p195
    %p202 = scmp.eq.s32.totalorder %s13, 1
    %p203 = por %p201, %p202
    %p204 = scmp.ne.s32.totalorder %s196, %s199
    %p205 = scmp.eq.s32.totalorder %s13, 0
    %p206 = por %p204, %p205
    %p207 = scmp.ne.s32.totalorder %s196, %s199
    %p208 = scmp.eq.s32.totalorder %s18, 1
    %p209 = por %p207, %p208
    %p210 = scmp.ne.s32.totalorder %s199, %s200
    %p211 = scmp.eq.s32.totalorder %s18, 0
    %p212 = por %p210, %p211
    %p213 = scmp.ne.s32.totalorder %s199, %s200
    %p214 = scmp.eq.s32.totalorder %s19, 1
    %p215 = por %p213, %p214
    %p217 = scmp.ne.s32.totalorder %s200, %s216
    %p218 = scmp.eq.s32.totalorder %s19, 0
    %p219 = por %p217, %p218
    %p220 = scmp.le.s32.totalorder 1, %s13
    %p221 = scmp.lt.s32.totalorder %s13, 3
    %p222 = pnand %p220, %p221
    %p223 = pneg %p222
    // Predicated region
    $region9: #{detr_forward.2} parent=5 // pred_check
      _
    $region10: #{detr_forward.2} parent=5 // pred_check_branch
      %225 = sbr.rel (%p222) target = $region12
    $region11: #{detr_forward.2} parent=5 // pred_region
      %s226 = ssub.s32 %s13, 1
      // Predicated region
      $region13: #{detr_forward.2} parent=11 // pred_check
        %p227 = pneg %p74
      $region14: #{detr_forward.2} parent=11 // pred_check_branch
        %229 = sbr.rel (%p227) target = $region16
      $region15: #{detr_forward.2} parent=11 // pred_region
        _
      $region16: #{detr_forward.2} parent=11 // pred_fallthru
        _
      // Predicated region
      $region17: #{detr_forward.2} parent=11 // pred_check
        %p230 = pneg %p95
      $region18: #{detr_forward.2} parent=11 // pred_check_branch
        %232 = sbr.rel (%p230) target = $region20
      $region19: #{detr_forward.2} parent=11 // pred_region
        _
      $region20: #{detr_forward.2} parent=11 // pred_fallthru
        _
      // Predicated region
      $region21: #{detr_forward.2} parent=11 // pred_check
        %p233 = pneg %p116
      $region22: #{detr_forward.2} parent=11 // pred_check_branch
        %235 = sbr.rel (%p233) target = $region24
      $region23: #{detr_forward.2} parent=11 // pred_region
        _
      $region24: #{detr_forward.2} parent=11 // pred_fallthru
        _
      // Predicated region
      $region25: #{detr_forward.2} parent=11 // pred_check
        %p236 = pneg %p137
      $region26: #{detr_forward.2} parent=11 // pred_check_branch
        %238 = sbr.rel (%p236) target = $region28
      $region27: #{detr_forward.2} parent=11 // pred_region
        _
      $region28: #{detr_forward.2} parent=11 // pred_fallthru
        _
      // Predicated region
      $region29: #{detr_forward.2} parent=11 // pred_check
        %p239 = pneg %p184
      $region30: #{detr_forward.2} parent=11 // pred_check_branch
        %241 = sbr.rel (%p239) target = $region32
      $region31: #{detr_forward.2} parent=11 // pred_region
        _
      $region32: #{detr_forward.2} parent=11 // pred_fallthru
        _
    $region12: #{detr_forward.2} parent=5 // pred_fallthru
      _
    %p242 = scmp.lt.s32.totalorder %s13, 2
    // Predicated region
    $region33: #{detr_forward.2} parent=5 // pred_check
      %p243 = pneg %p242
    $region34: #{detr_forward.2} parent=5 // pred_check_branch
      %245 = sbr.rel (%p243) target = $region36
    $region35: #{detr_forward.2} parent=5 // pred_region
      // Predicated region
      $region37: #{detr_forward.2} parent=35 // pred_check
        %p246 = pneg %p47
      $region38: #{detr_forward.2} parent=35 // pred_check_branch
        %248 = sbr.rel (%p246) target = $region40
      $region39: #{detr_forward.2} parent=35 // pred_region
        %s249 = smul.u32 8, %s21
        %p250 = scmp.lt.s32.totalorder %s20, 1
        %s251 = scalar_select %p250, %s20, 1
        %p252 = scmp.lt.s32.totalorder %s249, 7
        %s253 = scalar_select %p252, %s249, 7
        %s254 = smul.addr %s251, 8
        %s255 = sadd.s32 %s253, %s254
        %s256 = smul.addr %s255, 4
        %s257 = scalar_lea.vmem %s0, %s256
        %s258 = smul.u32 8, %s21
      $region40: #{detr_forward.2} parent=35 // pred_fallthru
        _
      // Predicated region
      $region41: #{detr_forward.2} parent=35 // pred_check
        %p259 = pneg %p157
      $region42: #{detr_forward.2} parent=35 // pred_check_branch
        %261 = sbr.rel (%p259) target = $region44
      $region43: #{detr_forward.2} parent=35 // pred_region
        %p262 = scmp.lt.s32.totalorder %s20, 1
        %s263 = scalar_select %p262, %s20, 1
        %s264 = scalar_lea.vmem %s5, %s263
      $region44: #{detr_forward.2} parent=35 // pred_fallthru
        _
    $region36: #{detr_forward.2} parent=5 // pred_fallthru
      _
    %p265 = scmp.le.s32.totalorder 1, %s13
    %p266 = scmp.lt.s32.totalorder %s13, 3
    %p267 = pnand %p265, %p266
    %p268 = pneg %p267
    // Predicated region
    $region45: #{detr_forward.2} parent=5 // pred_check
      _
    $region46: #{detr_forward.2} parent=5 // pred_check_branch
      %270 = sbr.rel (%p267) target = $region48
    $region47: #{detr_forward.2} parent=5 // pred_region
      %s271 = ssub.s32 %s13, 1
      %s272 = smul.u32 8, %s23
      %p273 = scmp.lt.s32.totalorder %s22, 1
      %s274 = scalar_select %p273, %s22, 1
      %p275 = scmp.lt.s32.totalorder %s272, 7
      %s276 = scalar_select %p275, %s272, 7
      %s277 = smul.addr %s274, 8
      %s278 = sadd.s32 %s276, %s277
      %s279 = smul.addr %s278, 4
      %s280 = scalar_lea.vmem %s0, %s279
      %p281 = pneg %p53
      %p282 = pneg %p50
      %p283 = pneg %p74
      %p284 = pneg %p71
      %p285 = pneg %p95
      %p286 = pneg %p92
      %p287 = pneg %p116
      %p288 = pneg %p113
      %p289 = pneg %p137
      %p290 = pneg %p134
      %p291 = scmp.lt.s32.totalorder %s22, 1
      %s292 = scalar_select %p291, %s22, 1
      %s293 = scalar_lea.vmem %s5, %s292
      %p294 = pneg %p163
      %p295 = pneg %p160
      %p296 = pneg %p184
      %p297 = pneg %p181
      %p298 = pneg %p212
      %p299 = pneg %p209
      %s300 = smul.u32 8, %s23
      %p301 = scmp.lt.s32.totalorder %s22, 1
      %s302 = scalar_select %p301, %s22, 1
      %p303 = scmp.lt.s32.totalorder %s300, 7
      %s304 = scalar_select %p303, %s300, 7
      %s305 = smul.addr %s304, 2
      %s306 = smul.addr %s302, 16
      %s307 = sadd.s32 %s305, %s306
      %s308 = smul.addr %s307, 4
      %s309 = scalar_lea.vmem %s7, %s308
      %s310 = smul.u32 8, %s23
      %p311 = scmp.lt.s32.totalorder %s22, 1
      %s312 = scalar_select %p311, %s22, 1
      %p313 = scmp.lt.s32.totalorder %s310, 7
      %s314 = scalar_select %p313, %s310, 7
      %s315 = smul.addr %s312, 8
      %s316 = sadd.s32 %s314, %s315
      %s317 = smul.addr %s316, 4
      %s318 = scalar_lea.vmem %s0, %s317
      %s319 = smul.u32 8, %s23
      %p320 = scmp.lt.s32.totalorder %s22, 1
      %s321 = scalar_select %p320, %s22, 1
      %s322 = scalar_lea.vmem %s5, %s321
      %s323 = smul.u32 8, %s23
      %p324 = scmp.lt.s32.totalorder %s22, 1
      %s325 = scalar_select %p324, %s22, 1
      %p326 = scmp.lt.s32.totalorder %s323, 7
      %s327 = scalar_select %p326, %s323, 7
      %s328 = smul.addr %s327, 2
      %s329 = smul.addr %s325, 16
      %s330 = sadd.s32 %s328, %s329
      %s331 = smul.addr %s330, 4
      %s332 = scalar_lea.vmem %s7, %s331
      %s333 = smul.u32 8, %s23
      %v335 = vld [vmem:[%s318] sm:$0xf]
      %v336 = vld [vmem:[%s318 + $0x4] sm:$0xf]
      %v337 = vld [vmem:[%s318 + $0x8] sm:$0xf]
      %v338 = vld [vmem:[%s318 + $0xc] sm:$0xf]
      %v339 = vld [vmem:[%s318 + $0x10] sm:$0xf]
      %v340 = vld [vmem:[%s318 + $0x14] sm:$0xf]
      %v341 = vld [vmem:[%s318 + $0x18] sm:$0xf]
      %v342 = vld [vmem:[%s318 + $0x1c] sm:$0xf]
      %v343 = vld [vmem:[%s1] sm:$0x3]
      %v344 = vld [vmem:[%s2] sm:$0x1]
      %v346 = vperm.slane %v344, 0
      %v356 = vunpack.c.l.b16 %v335
      %v357 = vunpack.c.l.b16 %v336
      %v358 = vunpack.c.l.b16 %v337
      %v359 = vunpack.c.l.b16 %v338
      %v360 = vunpack.c.l.b16 %v339
      %v361 = vunpack.c.l.b16 %v340
      %v362 = vunpack.c.l.b16 %v341
      %v363 = vunpack.c.l.b16 %v342
      %v364 = vpack.c.b16 %v357, %v356
      %v365 = vpack.c.b16 %v359, %v358
      %v366 = vpack.c.b16 %v361, %v360
      %v367 = vpack.c.b16 %v363, %v362
      %vm368 = vcmask 31744
      %v370 = vsel %vm368, %v364, 0
      %v373 = vsel %vm368, %v365, 0
      %v376 = vsel %vm368, %v366, 0
      %v379 = vsel %vm368, %v367, 0
      %vm381 = vcmask 1041408
      %v383 = vsel %vm381, %v343, 0
      %385 = vmatpush.bf16.msra.mxu0 0
      %386 = vmatpush.bf16.msra.mxu0 0
      %387 = vmatpush.bf16.msra.mxu0 0
      %388 = vmatpush.bf16.msra.mxu0 0
      %389 = vmatpush.bf16.msra.mxu0 0
      %390 = vmatpush.bf16.msra.mxu0 0
      %391 = vmatpush.bf16.msra.mxu0 0
      %392 = vmatpush.bf16.msra.mxu0 %v383
      %393 = vmatmul.bf16.gmra.mxu0 %v370
      %v394 = vpop.f32.mrf.mxu0
      %v395 = vadd.f32 %v346, %v394
      %v396 = vpop.f32.mrf.mxu0
      %v397 = vadd.f32 %v346, %v396
      %398 = vmatmul.bf16.gmra.mxu0 %v373
      %v399 = vpop.f32.mrf.mxu0
      %v400 = vadd.f32 %v346, %v399
      %v401 = vpop.f32.mrf.mxu0
      %v402 = vadd.f32 %v346, %v401
      %403 = vmatmul.bf16.gmra.mxu0 %v376
      %v404 = vpop.f32.mrf.mxu0
      %v405 = vadd.f32 %v346, %v404
      %v406 = vpop.f32.mrf.mxu0
      %v407 = vadd.f32 %v346, %v406
      %408 = vmatmul.bf16.gmra.mxu0 %v379
      %v409 = vpop.f32.mrf.mxu0
      %v410 = vadd.f32 %v346, %v409
      %v411 = vpop.f32.mrf.mxu0
      %v412 = vadd.f32 %v346, %v411
      %413 = vdwg.mxu0
      %v414 = vmax.f32 %v395, 0.0
      %v415 = vmax.f32 %v397, 0.0
      %v416 = vmax.f32 %v400, 0.0
      %v417 = vmax.f32 %v402, 0.0
      %v418 = vmax.f32 %v405, 0.0
      %v419 = vmax.f32 %v407, 0.0
      %v420 = vmax.f32 %v410, 0.0
      %v421 = vmax.f32 %v412, 0.0
      %v422 = vpack.c.bf16 %v415, %v414
      %v423 = vpack.c.bf16 %v417, %v416
      %v424 = vpack.c.bf16 %v419, %v418
      %v425 = vpack.c.bf16 %v421, %v420
      %v426 = vld [vmem:[%s3] sm:$0xf]
      %v427 = vld [vmem:[%s3 + $0x4] sm:$0xf]
      %v428 = vld [vmem:[%s3 + $0x8] sm:$0xf]
      %v429 = vld [vmem:[%s3 + $0xc] sm:$0xf]
      %v430 = vld [vmem:[%s3 + $0x10] sm:$0xf]
      %v431 = vld [vmem:[%s3 + $0x14] sm:$0xf]
      %v432 = vld [vmem:[%s3 + $0x18] sm:$0xf]
      %v433 = vld [vmem:[%s3 + $0x1c] sm:$0xf]
      %v434 = vld [vmem:[%s3 + $0x20] sm:$0xf]
      %v435 = vld [vmem:[%s3 + $0x24] sm:$0xf]
      %v436 = vld [vmem:[%s3 + $0x28] sm:$0xf]
      %v437 = vld [vmem:[%s3 + $0x2c] sm:$0xf]
      %v438 = vld [vmem:[%s3 + $0x30] sm:$0xf]
      %v439 = vld [vmem:[%s3 + $0x34] sm:$0xf]
      %v440 = vld [vmem:[%s3 + $0x38] sm:$0xf]
      %v441 = vld [vmem:[%s3 + $0x3c] sm:$0xf]
      %v442 = vld [vmem:[%s4] sm:$0x1]
      %v444 = vperm.slane %v442, 0
      %v462 = vunpack.c.l.b16 %v426
      %v463 = vunpack.c.l.b16 %v427
      %v464 = vunpack.c.l.b16 %v428
      %v465 = vunpack.c.l.b16 %v429
      %v466 = vunpack.c.l.b16 %v430
      %v467 = vunpack.c.l.b16 %v431
      %v468 = vunpack.c.l.b16 %v432
      %v469 = vunpack.c.l.b16 %v433
      %v470 = vunpack.c.l.b16 %v434
      %v471 = vunpack.c.l.b16 %v435
      %v472 = vunpack.c.l.b16 %v436
      %v473 = vunpack.c.l.b16 %v437
      %v474 = vunpack.c.l.b16 %v438
      %v475 = vunpack.c.l.b16 %v439
      %v476 = vunpack.c.l.b16 %v440
      %v477 = vunpack.c.l.b16 %v441
      %v478 = vpack.c.b16 %v463, %v462
      %v479 = vpack.c.b16 %v465, %v464
      %v480 = vpack.c.b16 %v467, %v466
      %v481 = vpack.c.b16 %v469, %v468
      %v482 = vpack.c.b16 %v471, %v470
      %v483 = vpack.c.b16 %v473, %v472
      %v484 = vpack.c.b16 %v475, %v474
      %v485 = vpack.c.b16 %v477, %v476
      %494 = vmatpush.bf16.msra.mxu0 %v485
      %495 = vmatpush.bf16.msra.mxu0 %v484
      %496 = vmatpush.bf16.msra.mxu0 %v483
      %497 = vmatpush.bf16.msra.mxu0 %v482
      %498 = vmatpush.bf16.msra.mxu0 %v481
      %499 = vmatpush.bf16.msra.mxu0 %v480
      %500 = vmatpush.bf16.msra.mxu0 %v479
      %501 = vmatpush.bf16.msra.mxu0 %v478
      %502 = vmatmul.bf16.gmra.mxu0 %v422
      %v503 = vpop.f32.mrf.mxu0
      %v504 = vadd.f32 %v444, %v503
      %v505 = vpop.f32.mrf.mxu0
      %v506 = vadd.f32 %v444, %v505
      %507 = vmatmul.bf16.gmra.mxu0 %v423
      %v508 = vpop.f32.mrf.mxu0
      %v509 = vadd.f32 %v444, %v508
      %v510 = vpop.f32.mrf.mxu0
      %v511 = vadd.f32 %v444, %v510
      %512 = vmatmul.bf16.gmra.mxu0 %v424
      %v513 = vpop.f32.mrf.mxu0
      %v514 = vadd.f32 %v444, %v513
      %v515 = vpop.f32.mrf.mxu0
      %v516 = vadd.f32 %v444, %v515
      %517 = vmatmul.bf16.gmra.mxu0 %v425
      %v518 = vpop.f32.mrf.mxu0
      %v519 = vadd.f32 %v444, %v518
      %v520 = vpop.f32.mrf.mxu0
      %v521 = vadd.f32 %v444, %v520
      %522 = vdwg.mxu0
      %v523 = vld [vmem:[%s322] sm:$0x1]
      %v525 = vperm.slane %v523, 0
      %v527 = vadd.f32 %v504, %v525
      %v528 = vadd.f32 %v506, %v525
      %v529 = vadd.f32 %v509, %v525
      %v530 = vadd.f32 %v511, %v525
      %v531 = vadd.f32 %v514, %v525
      %v532 = vadd.f32 %v516, %v525
      %v533 = vadd.f32 %v519, %v525
      %v534 = vadd.f32 %v521, %v525
      %v535 = vpack.c.bf16 %v528, %v527
      %v536 = vpack.c.bf16 %v530, %v529
      %v537 = vpack.c.bf16 %v532, %v531
      %v538 = vpack.c.bf16 %v534, %v533
      %v539 = vld [vmem:[%s6] sm:$0xff]
      %v540 = vld [vmem:[%s6 + $0x8] sm:$0xff]
      %v541 = vld [vmem:[%s6 + $0x10] sm:$0xff]
      %v542 = vld [vmem:[%s6 + $0x18] sm:$0xff]
      %v543 = vld [vmem:[%s6 + $0x20] sm:$0xff]
      %v544 = vld [vmem:[%s6 + $0x28] sm:$0xff]
      %v545 = vld [vmem:[%s6 + $0x30] sm:$0xff]
      %v546 = vld [vmem:[%s6 + $0x38] sm:$0xff]
      %v547 = vld [vmem:[%s6 + $0x40] sm:$0xff]
      %v548 = vld [vmem:[%s6 + $0x48] sm:$0xff]
      %v549 = vld [vmem:[%s6 + $0x50] sm:$0xff]
      %v550 = vld [vmem:[%s6 + $0x58] sm:$0xff]
      %v551 = vld [vmem:[%s6 + $0x60] sm:$0xff]
      %v552 = vld [vmem:[%s6 + $0x68] sm:$0xff]
      %v553 = vld [vmem:[%s6 + $0x70] sm:$0xff]
      %v554 = vld [vmem:[%s6 + $0x78] sm:$0xff]
      %v571 = vunpack.c.l.b16 %v539
      %v572 = vunpack.c.h.b16 %v539
      %v573 = vunpack.c.l.b16 %v540
      %v574 = vunpack.c.h.b16 %v540
      %v575 = vunpack.c.l.b16 %v541
      %v576 = vunpack.c.h.b16 %v541
      %v577 = vunpack.c.l.b16 %v542
      %v578 = vunpack.c.h.b16 %v542
      %v579 = vunpack.c.l.b16 %v543
      %v580 = vunpack.c.h.b16 %v543
      %v581 = vunpack.c.l.b16 %v544
      %v582 = vunpack.c.h.b16 %v544
      %v583 = vunpack.c.l.b16 %v545
      %v584 = vunpack.c.h.b16 %v545
      %v585 = vunpack.c.l.b16 %v546
      %v586 = vunpack.c.h.b16 %v546
      %v587 = vunpack.c.l.b16 %v547
      %v588 = vunpack.c.h.b16 %v547
      %v589 = vunpack.c.l.b16 %v548
      %v590 = vunpack.c.h.b16 %v548
      %v591 = vunpack.c.l.b16 %v549
      %v592 = vunpack.c.h.b16 %v549
      %v593 = vunpack.c.l.b16 %v550
      %v594 = vunpack.c.h.b16 %v550
      %v595 = vunpack.c.l.b16 %v551
      %v596 = vunpack.c.h.b16 %v551
      %v597 = vunpack.c.l.b16 %v552
      %v598 = vunpack.c.h.b16 %v552
      %v599 = vunpack.c.l.b16 %v553
      %v600 = vunpack.c.h.b16 %v553
      %v601 = vunpack.c.l.b16 %v554
      %v602 = vunpack.c.h.b16 %v554
      %v603 = vpack.c.b16 %v573, %v571
      %v604 = vpack.c.b16 %v574, %v572
      %v605 = vpack.c.b16 %v577, %v575
      %v606 = vpack.c.b16 %v578, %v576
      %v607 = vpack.c.b16 %v581, %v579
      %v608 = vpack.c.b16 %v582, %v580
      %v609 = vpack.c.b16 %v585, %v583
      %v610 = vpack.c.b16 %v586, %v584
      %v611 = vpack.c.b16 %v589, %v587
      %v612 = vpack.c.b16 %v590, %v588
      %v613 = vpack.c.b16 %v593, %v591
      %v614 = vpack.c.b16 %v594, %v592
      %v615 = vpack.c.b16 %v597, %v595
      %v616 = vpack.c.b16 %v598, %v596
      %v617 = vpack.c.b16 %v601, %v599
      %v618 = vpack.c.b16 %v602, %v600
      %635 = vmatpush.bf16.msra.mxu0 %v617
      %636 = vmatpush.bf16.msra.mxu0 %v615
      %637 = vmatpush.bf16.msra.mxu0 %v613
      %638 = vmatpush.bf16.msra.mxu0 %v611
      %639 = vmatpush.bf16.msra.mxu0 %v609
      %640 = vmatpush.bf16.msra.mxu0 %v607
      %641 = vmatpush.bf16.msra.mxu0 %v605
      %642 = vmatpush.bf16.msra.mxu0 %v603
      %643 = vmatmul.bf16.gmra.mxu0 %v535
      %v644 = vpop.f32.mrf.mxu0
      %v645 = vadd.f32 0.0, %v644
      %v646 = vpop.f32.mrf.mxu0
      %v647 = vadd.f32 0.0, %v646
      %648 = vmatmul.bf16.gmra.mxu0 %v536
      %v649 = vpop.f32.mrf.mxu0
      %v650 = vadd.f32 0.0, %v649
      %v651 = vpop.f32.mrf.mxu0
      %v652 = vadd.f32 0.0, %v651
      %653 = vmatmul.bf16.gmra.mxu0 %v537
      %v654 = vpop.f32.mrf.mxu0
      %v655 = vadd.f32 0.0, %v654
      %v656 = vpop.f32.mrf.mxu0
      %v657 = vadd.f32 0.0, %v656
      %658 = vmatmul.bf16.gmra.mxu0 %v538
      %v659 = vpop.f32.mrf.mxu0
      %v660 = vadd.f32 0.0, %v659
      %v661 = vpop.f32.mrf.mxu0
      %v662 = vadd.f32 0.0, %v661
      %663 = vdwg.mxu0
      %664 = vmatpush.bf16.msra.mxu0 %v618
      %665 = vmatpush.bf16.msra.mxu0 %v616
      %666 = vmatpush.bf16.msra.mxu0 %v614
      %667 = vmatpush.bf16.msra.mxu0 %v612
      %668 = vmatpush.bf16.msra.mxu0 %v610
      %669 = vmatpush.bf16.msra.mxu0 %v608
      %670 = vmatpush.bf16.msra.mxu0 %v606
      %671 = vmatpush.bf16.msra.mxu0 %v604
      %672 = vmatmul.bf16.gmra.mxu0 %v535
      %v673 = vpop.f32.mrf.mxu0
      %v674 = vadd.f32 0.0, %v673
      %v675 = vpop.f32.mrf.mxu0
      %v676 = vadd.f32 0.0, %v675
      %677 = vmatmul.bf16.gmra.mxu0 %v536
      %v678 = vpop.f32.mrf.mxu0
      %v679 = vadd.f32 0.0, %v678
      %v680 = vpop.f32.mrf.mxu0
      %v681 = vadd.f32 0.0, %v680
      %682 = vmatmul.bf16.gmra.mxu0 %v537
      %v683 = vpop.f32.mrf.mxu0
      %v684 = vadd.f32 0.0, %v683
      %v685 = vpop.f32.mrf.mxu0
      %v686 = vadd.f32 0.0, %v685
      %687 = vmatmul.bf16.gmra.mxu0 %v538
      %v688 = vpop.f32.mrf.mxu0
      %v689 = vadd.f32 0.0, %v688
      %v690 = vpop.f32.mrf.mxu0
      %v691 = vadd.f32 0.0, %v690
      %692 = vdwg.mxu0
      %v693 = vpack.c.bf16 %v674, %v645
      %v694 = vpack.c.bf16 %v676, %v647
      %v695 = vpack.c.bf16 %v679, %v650
      %v696 = vpack.c.bf16 %v681, %v652
      %v697 = vpack.c.bf16 %v684, %v655
      %v698 = vpack.c.bf16 %v686, %v657
      %v699 = vpack.c.bf16 %v689, %v660
      %v700 = vpack.c.bf16 %v691, %v662
      %701 = vst [vmem:[%s332] sm:$0xff] %v693
      %702 = vst [vmem:[%s332 + $0x8] sm:$0xff] %v694
      %703 = vst [vmem:[%s332 + $0x10] sm:$0xff] %v695
      %704 = vst [vmem:[%s332 + $0x18] sm:$0xff] %v696
      %705 = vst [vmem:[%s332 + $0x20] sm:$0xff] %v697
      %706 = vst [vmem:[%s332 + $0x28] sm:$0xff] %v698
      %707 = vst [vmem:[%s332 + $0x30] sm:$0xff] %v699
      %708 = vst [vmem:[%s332 + $0x38] sm:$0xff] %v700
      %s709 = smul.u32 8, %s23
      %p710 = scmp.lt.s32.totalorder %s22, 1
      %s711 = scalar_select %p710, %s22, 1
      %p712 = scmp.lt.s32.totalorder %s709, 7
      %s713 = scalar_select %p712, %s709, 7
      %s714 = smul.addr %s713, 2
      %s715 = smul.addr %s711, 16
      %s716 = sadd.s32 %s714, %s715
      %s717 = smul.addr %s716, 4
      %s718 = scalar_lea.vmem %s7, %s717
      // Predicated region
      $region49: #{detr_forward.2} parent=47 // pred_check
        %p719 = pneg %p209
      $region50: #{detr_forward.2} parent=47 // pred_check_branch
        %721 = sbr.rel (%p719) target = $region52
      $region51: #{detr_forward.2} parent=47 // pred_region
        %s722 = smul.u32 8, %s23
      $region52: #{detr_forward.2} parent=47 // pred_fallthru
        _
    $region48: #{detr_forward.2} parent=5 // pred_fallthru
      _
    %p723 = scmp.le.s32.totalorder 2, %s13
    // Predicated region
    $region53: #{detr_forward.2} parent=5 // pred_check
      %p724 = pneg %p723
    $region54: #{detr_forward.2} parent=5 // pred_check_branch
      %726 = sbr.rel (%p724) target = $region56
    $region55: #{detr_forward.2} parent=5 // pred_region
      %s727 = ssub.s32 %s13, 2
      // Predicated region
      $region57: #{detr_forward.2} parent=55 // pred_check
        %p728 = pneg %p215
      $region58: #{detr_forward.2} parent=55 // pred_check_branch
        %730 = sbr.rel (%p728) target = $region60
      $region59: #{detr_forward.2} parent=55 // pred_region
        %s731 = smul.u32 8, %s25
        %p732 = scmp.lt.s32.totalorder %s24, 1
        %s733 = scalar_select %p732, %s24, 1
        %p734 = scmp.lt.s32.totalorder %s731, 7
        %s735 = scalar_select %p734, %s731, 7
        %s736 = smul.addr %s735, 2
        %s737 = smul.addr %s733, 16
        %s738 = sadd.s32 %s736, %s737
        %s739 = smul.addr %s738, 4
        %s740 = scalar_lea.vmem %s7, %s739
      $region60: #{detr_forward.2} parent=55 // pred_fallthru
        _
    $region56: #{detr_forward.2} parent=5 // pred_fallthru
      _
  $region6: #{detr_forward.2} parent=0 // loop_footer
    %s17 = sadd.s32 1, %s13
  $region7: #{detr_forward.2} parent=0 // loop_footer_branch
    %12 = sbr.rel target = $region3
  $region8: #{detr_forward.2} parent=0 // loop_exit
    _

// kernel: detr_forward.3
$region0: #{detr_forward.3}
  #allocation0 [shape = 'u32[]', space=smem, size = 0x4, offset = 0x4, fixed_abs, tag = 'smem constant byte address 0x4 - core index']
  #allocation1 [shape = 'u32[72,128]{1,0:T(1,128)}', space=vmem, size = 0x9000, scoped, tag = 'internal scratch']
  %s0 = inlined_call_operand.vmem [shape: bf16[16,128], index: 0, kind: input, shape index: {}]
  %s1 = inlined_call_operand.vmem [shape: bf16[128,128], index: 1, kind: input, shape index: {}]
  %s2 = inlined_call_operand.vmem [shape: bf16[2,64,256], index: 2, kind: input, shape index: {}]
  %s3 = inlined_call_operand.vmem [shape: bf16[128,128], index: 3, kind: input, shape index: {}]
  %s4 = inlined_call_operand.vmem [shape: f32[1,128], index: 4, kind: input, shape index: {}]
  %s5 = inlined_call_operand.vmem [shape: f32[2,16,128], index: 5, kind: output, shape index: {}]
  %s6 = sld [smem:[#allocation0]]
  $region53: #{detr_forward.3} parent=0
    _
  %s8 = ssub.s32 1, %s6
  %s9 = scalar_select 0, %s8, %s6
  loop: start=0, step=1, limit=4
  $region2: #{detr_forward.3} parent=0 // loop_pre_header
    _
  $region3: #{detr_forward.3} parent=0 // loop_header
    %s11 = sphi 0, %s15
    %p12 = scmp.ge.s32.totalorder %s11, 4
    %s19 = sphi 0, %s19
    %s21 = sphi 0, %s19
    %s22 = sphi 0, %s21
    %s36 = sphi 0, %s22
    %s40 = sphi 0, %s40
    %s42 = sphi 0, %s40
    %s43 = sphi 0, %s42
    %s57 = sphi 0, %s43
    %s63 = sphi 0, %s65
    %s66 = sphi 0, %s63
    %s67 = sphi 0, %s66
    %s83 = sphi 0, %s67
    %s87 = sphi 0, %s87
    %s89 = sphi 0, %s87
    %s90 = sphi 0, %s89
    %s104 = sphi 0, %s90
    %s108 = sphi 0, %s108
    %s110 = sphi 0, %s108
    %s111 = sphi 0, %s110
    %s125 = sphi 0, %s111
    %s131 = sphi 0, %s133
    %s134 = sphi 0, %s131
    %s135 = sphi 0, %s134
    %s151 = sphi 0, %s135
  $region4: #{detr_forward.3} parent=0 // loop_header_branch
    %14 = sbr.rel (%p12) target = $region8
  $region5: #{detr_forward.3} parent=0 // loop_body
    %s16 = ssub.s32 %s11, 1
    %s17 = ssub.s32 %s11, 2
    %s18 = sadd.s32 %s11, 1
    %s20 = sadd.s32 %s19, 1
    %p23 = scmp.eq.s32.totalorder %s11, 1
    %p24 = scmp.ne.s32.totalorder %s19, %s21
    %p25 = scmp.eq.s32.totalorder %s11, 0
    %p26 = por %p24, %p25
    %p27 = scmp.ne.s32.totalorder %s19, %s21
    %p28 = scmp.eq.s32.totalorder %s16, 1
    %p29 = por %p27, %p28
    %p30 = scmp.ne.s32.totalorder %s21, %s22
    %p31 = scmp.eq.s32.totalorder %s16, 0
    %p32 = por %p30, %p31
    %p33 = scmp.ne.s32.totalorder %s21, %s22
    %p34 = scmp.eq.s32.totalorder %s17, 1
    %p35 = por %p33, %p34
    %p37 = scmp.ne.s32.totalorder %s22, %s36
    %p38 = scmp.eq.s32.totalorder %s17, 0
    %p39 = por %p37, %p38
    %s41 = sadd.s32 %s40, 1
    %p44 = scmp.eq.s32.totalorder %s11, 1
    %p45 = scmp.ne.s32.totalorder %s40, %s42
    %p46 = scmp.eq.s32.totalorder %s11, 0
    %p47 = por %p45, %p46
    %p48 = scmp.ne.s32.totalorder %s40, %s42
    %p49 = scmp.eq.s32.totalorder %s16, 1
    %p50 = por %p48, %p49
    %p51 = scmp.ne.s32.totalorder %s42, %s43
    %p52 = scmp.eq.s32.totalorder %s16, 0
    %p53 = por %p51, %p52
    %p54 = scmp.ne.s32.totalorder %s42, %s43
    %p55 = scmp.eq.s32.totalorder %s17, 1
    %p56 = por %p54, %p55
    %p58 = scmp.ne.s32.totalorder %s43, %s57
    %p59 = scmp.eq.s32.totalorder %s17, 0
    %p60 = por %p58, %p59
    %s61 = ssub.s32 %s11, %s18
    %p62 = scmp.eq.s32.totalorder %s61, 0
    %s64 = sadd.s32 %s63, 1
    %s65 = scalar_select %p62, %s63, %s64
    %p68 = pneg %p62
    %p69 = scmp.eq.s32.totalorder %s11, 1
    %p70 = por %p68, %p69
    %p71 = scmp.ne.s32.totalorder %s63, %s66
    %p72 = scmp.eq.s32.totalorder %s11, 0
    %p73 = por %p71, %p72
    %p74 = scmp.ne.s32.totalorder %s63, %s66
    %p75 = scmp.eq.s32.totalorder %s16, 1
    %p76 = por %p74, %p75
    %p77 = scmp.ne.s32.totalorder %s66, %s67
    %p78 = scmp.eq.s32.totalorder %s16, 0
    %p79 = por %p77, %p78
    %p80 = scmp.ne.s32.totalorder %s66, %s67
    %p81 = scmp.eq.s32.totalorder %s17, 1
    %p82 = por %p80, %p81
    %p84 = scmp.ne.s32.totalorder %s67, %s83
    %p85 = scmp.eq.s32.totalorder %s17, 0
    %p86 = por %p84, %p85
    %s88 = sadd.s32 %s87, 1
    %p91 = scmp.eq.s32.totalorder %s11, 1
    %p92 = scmp.ne.s32.totalorder %s87, %s89
    %p93 = scmp.eq.s32.totalorder %s11, 0
    %p94 = por %p92, %p93
    %p95 = scmp.ne.s32.totalorder %s87, %s89
    %p96 = scmp.eq.s32.totalorder %s16, 1
    %p97 = por %p95, %p96
    %p98 = scmp.ne.s32.totalorder %s89, %s90
    %p99 = scmp.eq.s32.totalorder %s16, 0
    %p100 = por %p98, %p99
    %p101 = scmp.ne.s32.totalorder %s89, %s90
    %p102 = scmp.eq.s32.totalorder %s17, 1
    %p103 = por %p101, %p102
    %p105 = scmp.ne.s32.totalorder %s90, %s104
    %p106 = scmp.eq.s32.totalorder %s17, 0
    %p107 = por %p105, %p106
    %s109 = sadd.s32 %s108, 1
    %p112 = scmp.eq.s32.totalorder %s11, 1
    %p113 = scmp.ne.s32.totalorder %s108, %s110
    %p114 = scmp.eq.s32.totalorder %s11, 0
    %p115 = por %p113, %p114
    %p116 = scmp.ne.s32.totalorder %s108, %s110
    %p117 = scmp.eq.s32.totalorder %s16, 1
    %p118 = por %p116, %p117
    %p119 = scmp.ne.s32.totalorder %s110, %s111
    %p120 = scmp.eq.s32.totalorder %s16, 0
    %p121 = por %p119, %p120
    %p122 = scmp.ne.s32.totalorder %s110, %s111
    %p123 = scmp.eq.s32.totalorder %s17, 1
    %p124 = por %p122, %p123
    %p126 = scmp.ne.s32.totalorder %s111, %s125
    %p127 = scmp.eq.s32.totalorder %s17, 0
    %p128 = por %p126, %p127
    %s129 = ssub.s32 %s11, %s18
    %p130 = scmp.eq.s32.totalorder %s129, 0
    %s132 = sadd.s32 %s131, 1
    %s133 = scalar_select %p130, %s131, %s132
    %p136 = pneg %p130
    %p137 = scmp.eq.s32.totalorder %s11, 1
    %p138 = por %p136, %p137
    %p139 = scmp.ne.s32.totalorder %s131, %s134
    %p140 = scmp.eq.s32.totalorder %s11, 0
    %p141 = por %p139, %p140
    %p142 = scmp.ne.s32.totalorder %s131, %s134
    %p143 = scmp.eq.s32.totalorder %s16, 1
    %p144 = por %p142, %p143
    %p145 = scmp.ne.s32.totalorder %s134, %s135
    %p146 = scmp.eq.s32.totalorder %s16, 0
    %p147 = por %p145, %p146
    %p148 = scmp.ne.s32.totalorder %s134, %s135
    %p149 = scmp.eq.s32.totalorder %s17, 1
    %p150 = por %p148, %p149
    %p152 = scmp.ne.s32.totalorder %s135, %s151
    %p153 = scmp.eq.s32.totalorder %s17, 0
    %p154 = por %p152, %p153
    %p155 = scmp.le.s32.totalorder 1, %s11
    %p156 = scmp.lt.s32.totalorder %s11, 3
    %p157 = pnand %p155, %p156
    %p158 = pneg %p157
    // Predicated region
    $region9: #{detr_forward.3} parent=5 // pred_check
      _
    $region10: #{detr_forward.3} parent=5 // pred_check_branch
      %160 = sbr.rel (%p157) target = $region12
    $region11: #{detr_forward.3} parent=5 // pred_region
      %s161 = ssub.s32 %s11, 1
      // Predicated region
      $region13: #{detr_forward.3} parent=11 // pred_check
        %p162 = pneg %p32
      $region14: #{detr_forward.3} parent=11 // pred_check_branch
        %164 = sbr.rel (%p162) target = $region16
      $region15: #{detr_forward.3} parent=11 // pred_region
        _
      $region16: #{detr_forward.3} parent=11 // pred_fallthru
        _
      // Predicated region
      $region17: #{detr_forward.3} parent=11 // pred_check
        %p165 = pneg %p53
      $region18: #{detr_forward.3} parent=11 // pred_check_branch
        %167 = sbr.rel (%p165) target = $region20
      $region19: #{detr_forward.3} parent=11 // pred_region
        _
      $region20: #{detr_forward.3} parent=11 // pred_fallthru
        _
      // Predicated region
      $region21: #{detr_forward.3} parent=11 // pred_check
        %p168 = pneg %p100
      $region22: #{detr_forward.3} parent=11 // pred_check_branch
        %170 = sbr.rel (%p168) target = $region24
      $region23: #{detr_forward.3} parent=11 // pred_region
        _
      $region24: #{detr_forward.3} parent=11 // pred_fallthru
        _
      // Predicated region
      $region25: #{detr_forward.3} parent=11 // pred_check
        %p171 = pneg %p121
      $region26: #{detr_forward.3} parent=11 // pred_check_branch
        %173 = sbr.rel (%p171) target = $region28
      $region27: #{detr_forward.3} parent=11 // pred_region
        _
      $region28: #{detr_forward.3} parent=11 // pred_fallthru
        _
    $region12: #{detr_forward.3} parent=5 // pred_fallthru
      _
    %p174 = scmp.lt.s32.totalorder %s11, 2
    // Predicated region
    $region29: #{detr_forward.3} parent=5 // pred_check
      %p175 = pneg %p174
    $region30: #{detr_forward.3} parent=5 // pred_check_branch
      %177 = sbr.rel (%p175) target = $region32
    $region31: #{detr_forward.3} parent=5 // pred_region
      // Predicated region
      $region33: #{detr_forward.3} parent=31 // pred_check
        %p178 = pneg %p73
      $region34: #{detr_forward.3} parent=31 // pred_check_branch
        %180 = sbr.rel (%p178) target = $region36
      $region35: #{detr_forward.3} parent=31 // pred_region
        %p181 = scmp.lt.s32.totalorder %s11, 1
        %s182 = scalar_select %p181, %s11, 1
        %s183 = smul.addr %s182, 16
        %s184 = smul.addr %s183, 4
        %s185 = scalar_lea.vmem %s2, %s184
      $region36: #{detr_forward.3} parent=31 // pred_fallthru
        _
    $region32: #{detr_forward.3} parent=5 // pred_fallthru
      _
    %p186 = scmp.le.s32.totalorder 1, %s11
    %p187 = scmp.lt.s32.totalorder %s11, 3
    %p188 = pnand %p186, %p187
    %p189 = pneg %p188
    // Predicated region
    $region37: #{detr_forward.3} parent=5 // pred_check
      _
    $region38: #{detr_forward.3} parent=5 // pred_check_branch
      %191 = sbr.rel (%p188) target = $region40
    $region39: #{detr_forward.3} parent=5 // pred_region
      %s192 = ssub.s32 %s11, 1
      %p193 = pneg %p32
      %p194 = pneg %p29
      %p195 = pneg %p53
      %p196 = pneg %p50
      %p197 = scmp.lt.s32.totalorder %s16, 1
      %s198 = scalar_select %p197, %s16, 1
      %s199 = smul.addr %s198, 16
      %s200 = smul.addr %s199, 4
      %s201 = scalar_lea.vmem %s2, %s200
      %p202 = pneg %p79
      %p203 = pneg %p76
      %p204 = pneg %p100
      %p205 = pneg %p97
      %p206 = pneg %p121
      %p207 = pneg %p118
      %p208 = pneg %p147
      %p209 = pneg %p144
      %p210 = scmp.lt.s32.totalorder %s16, 1
      %s211 = scalar_select %p210, %s16, 1
      %s212 = smul.addr %s211, 2
      %s213 = smul.addr %s212, 8
      %s214 = scalar_lea.vmem %s5, %s213
      %p215 = scmp.lt.s32.totalorder %s16, 1
      %s216 = scalar_select %p215, %s16, 1
      %s217 = smul.addr %s216, 16
      %s218 = smul.addr %s217, 4
      %s219 = scalar_lea.vmem %s2, %s218
      %p220 = scmp.lt.s32.totalorder %s16, 1
      %s221 = scalar_select %p220, %s16, 1
      %s222 = smul.addr %s221, 2
      %s223 = smul.addr %s222, 8
      %s224 = scalar_lea.vmem %s5, %s223
      %v226 = vld [vmem:[%s0] sm:$0xf]
      %v227 = vld [vmem:[%s0 + $0x4] sm:$0xf]
      %v228 = vld [vmem:[%s1] sm:$0xf]
      %v229 = vld [vmem:[%s1 + $0x4] sm:$0xf]
      %v230 = vld [vmem:[%s1 + $0x8] sm:$0xf]
      %v231 = vld [vmem:[%s1 + $0xc] sm:$0xf]
      %v232 = vld [vmem:[%s1 + $0x10] sm:$0xf]
      %v233 = vld [vmem:[%s1 + $0x14] sm:$0xf]
      %v234 = vld [vmem:[%s1 + $0x18] sm:$0xf]
      %v235 = vld [vmem:[%s1 + $0x1c] sm:$0xf]
      %v236 = vld [vmem:[%s1 + $0x20] sm:$0xf]
      %v237 = vld [vmem:[%s1 + $0x24] sm:$0xf]
      %v238 = vld [vmem:[%s1 + $0x28] sm:$0xf]
      %v239 = vld [vmem:[%s1 + $0x2c] sm:$0xf]
      %v240 = vld [vmem:[%s1 + $0x30] sm:$0xf]
      %v241 = vld [vmem:[%s1 + $0x34] sm:$0xf]
      %v242 = vld [vmem:[%s1 + $0x38] sm:$0xf]
      %v243 = vld [vmem:[%s1 + $0x3c] sm:$0xf]
      %v246 = vunpack.c.l.b16 %v226
      %v247 = vunpack.c.l.b16 %v227
      %v248 = vpack.c.b16 %v247, %v246
      %v266 = vunpack.c.l.b16 %v228
      %v267 = vunpack.c.l.b16 %v229
      %v268 = vunpack.c.l.b16 %v230
      %v269 = vunpack.c.l.b16 %v231
      %v270 = vunpack.c.l.b16 %v232
      %v271 = vunpack.c.l.b16 %v233
      %v272 = vunpack.c.l.b16 %v234
      %v273 = vunpack.c.l.b16 %v235
      %v274 = vunpack.c.l.b16 %v236
      %v275 = vunpack.c.l.b16 %v237
      %v276 = vunpack.c.l.b16 %v238
      %v277 = vunpack.c.l.b16 %v239
      %v278 = vunpack.c.l.b16 %v240
      %v279 = vunpack.c.l.b16 %v241
      %v280 = vunpack.c.l.b16 %v242
      %v281 = vunpack.c.l.b16 %v243
      %v282 = vpack.c.b16 %v267, %v266
      %v283 = vpack.c.b16 %v269, %v268
      %v284 = vpack.c.b16 %v271, %v270
      %v285 = vpack.c.b16 %v273, %v272
      %v286 = vpack.c.b16 %v275, %v274
      %v287 = vpack.c.b16 %v277, %v276
      %v288 = vpack.c.b16 %v279, %v278
      %v289 = vpack.c.b16 %v281, %v280
      %298 = vmatpush.bf16.msra.mxu0 %v289
      %299 = vmatpush.bf16.msra.mxu0 %v288
      %300 = vmatpush.bf16.msra.mxu0 %v287
      %301 = vmatpush.bf16.msra.mxu0 %v286
      %302 = vmatpush.bf16.msra.mxu0 %v285
      %303 = vmatpush.bf16.msra.mxu0 %v284
      %304 = vmatpush.bf16.msra.mxu0 %v283
      %305 = vmatpush.bf16.msra.mxu0 %v282
      %306 = vmatmul.bf16.gmra.mxu0 %v248
      %v307 = vpop.f32.mrf.mxu0
      %v308 = vadd.f32 0.0, %v307
      %v309 = vpop.f32.mrf.mxu0
      %v310 = vadd.f32 0.0, %v309
      %311 = vdwg.mxu0
      %v312 = vmul.f32 %v308, 0.088388346
      %v313 = vmul.f32 %v310, 0.088388346
      %v314 = vpack.c.bf16 %v313, %v312
      %v315 = vld [vmem:[%s219] sm:$0xff]
      %v316 = vld [vmem:[%s219 + $0x8] sm:$0xff]
      %v317 = vld [vmem:[%s219 + $0x10] sm:$0xff]
      %v318 = vld [vmem:[%s219 + $0x18] sm:$0xff]
      %v319 = vld [vmem:[%s219 + $0x20] sm:$0xff]
      %v320 = vld [vmem:[%s219 + $0x28] sm:$0xff]
      %v321 = vld [vmem:[%s219 + $0x30] sm:$0xff]
      %v322 = vld [vmem:[%s219 + $0x38] sm:$0xff]
      %v331 = vunpack.c.l.b16 %v315
      %v332 = vunpack.c.l.b16 %v316
      %v333 = vunpack.c.l.b16 %v317
      %v334 = vunpack.c.l.b16 %v318
      %v335 = vunpack.c.l.b16 %v319
      %v336 = vunpack.c.l.b16 %v320
      %v337 = vunpack.c.l.b16 %v321
      %v338 = vunpack.c.l.b16 %v322
      %v339 = vpack.c.b16 %v332, %v331
      %v340 = vpack.c.b16 %v334, %v333
      %v341 = vpack.c.b16 %v336, %v335
      %v342 = vpack.c.b16 %v338, %v337
      %347 = vmatpush.bf16.xpose.msra.mxu0 0
      %348 = vmatpush.bf16.xpose.msra.mxu0 0
      %349 = vmatpush.bf16.xpose.msra.mxu0 0
      %350 = vmatpush.bf16.xpose.msra.mxu0 0
      %351 = vmatpush.bf16.xpose.msra.mxu0 %v342
      %352 = vmatpush.bf16.xpose.msra.mxu0 %v341
      %353 = vmatpush.bf16.xpose.msra.mxu0 %v340
      %354 = vmatpush.bf16.xpose.msra.mxu0 %v339
      %355 = vmatmul.bf16.gmra.mxu0 %v314
      %v356 = vpop.f32.mrf.mxu0
      %v357 = vadd.f32 0.0, %v356
      %v358 = vpop.f32.mrf.mxu0
      %v359 = vadd.f32 0.0, %v358
      %360 = vdwg.mxu0
      %vm361 = vcmask 523264
      %v362 = vsel %vm361, %v357, -inf
      %363 = vmax.xlane.f32.xlu0 %v362
      %v364 = vpop.xlane.xlu0 %363
      %v365 = vsel %vm361, %v359, -inf
      %366 = vmax.xlane.f32.xlu0 %v365
      %v367 = vpop.xlane.xlu0 %366
      %v368 = vsub.f32 %v357, %v364
      %v369 = vsub.f32 %v359, %v367
      %v370 = vmul.f32 %v368, 1.442695
      %v371 = vpow.pop %v370
      %v372 = vmul.f32 %v369, 1.442695
      %v373 = vpow.pop %v372
      %v374 = vsel %vm361, %v371, 0.0
      %375 = vadd.xlane.f32.xlu0 %v374
      %v376 = vpop.xlane.xlu0 %375
      %v377 = vsel %vm361, %v373, 0.0
      %378 = vadd.xlane.f32.xlu0 %v377
      %v379 = vpop.xlane.xlu0 %378
      %v380 = vrcp.pop %v376
      %v381 = vrcp.pop %v379
      %v382 = vmul.f32 %v371, %v380
      %v383 = vmul.f32 %v373, %v381
      %v384 = vpack.c.bf16 %v383, %v382
      %v385 = vunpack.c.h.b16 %v315
      %v386 = vunpack.c.h.b16 %v316
      %v387 = vunpack.c.h.b16 %v317
      %v388 = vunpack.c.h.b16 %v318
      %v389 = vunpack.c.h.b16 %v319
      %v390 = vunpack.c.h.b16 %v320
      %v391 = vunpack.c.h.b16 %v321
      %v392 = vunpack.c.h.b16 %v322
      %v393 = vpack.c.b16 %v386, %v385
      %v394 = vpack.c.b16 %v388, %v387
      %v395 = vpack.c.b16 %v390, %v389
      %v396 = vpack.c.b16 %v392, %v391
      %v402 = vsel %vm361, %v384, 0
      %404 = vmatpush.bf16.msra.mxu0 0
      %405 = vmatpush.bf16.msra.mxu0 0
      %406 = vmatpush.bf16.msra.mxu0 0
      %407 = vmatpush.bf16.msra.mxu0 0
      %408 = vmatpush.bf16.msra.mxu0 %v396
      %409 = vmatpush.bf16.msra.mxu0 %v395
      %410 = vmatpush.bf16.msra.mxu0 %v394
      %411 = vmatpush.bf16.msra.mxu0 %v393
      %412 = vmatmul.bf16.gmra.mxu0 %v402
      %v413 = vpop.f32.mrf.mxu0
      %v414 = vadd.f32 0.0, %v413
      %v415 = vpop.f32.mrf.mxu0
      %v416 = vadd.f32 0.0, %v415
      %417 = vdwg.mxu0
      %v418 = vpack.c.bf16 %v416, %v414
      %v419 = vld [vmem:[%s3] sm:$0xf]
      %v420 = vld [vmem:[%s3 + $0x4] sm:$0xf]
      %v421 = vld [vmem:[%s3 + $0x8] sm:$0xf]
      %v422 = vld [vmem:[%s3 + $0xc] sm:$0xf]
      %v423 = vld [vmem:[%s3 + $0x10] sm:$0xf]
      %v424 = vld [vmem:[%s3 + $0x14] sm:$0xf]
      %v425 = vld [vmem:[%s3 + $0x18] sm:$0xf]
      %v426 = vld [vmem:[%s3 + $0x1c] sm:$0xf]
      %v427 = vld [vmem:[%s3 + $0x20] sm:$0xf]
      %v428 = vld [vmem:[%s3 + $0x24] sm:$0xf]
      %v429 = vld [vmem:[%s3 + $0x28] sm:$0xf]
      %v430 = vld [vmem:[%s3 + $0x2c] sm:$0xf]
      %v431 = vld [vmem:[%s3 + $0x30] sm:$0xf]
      %v432 = vld [vmem:[%s3 + $0x34] sm:$0xf]
      %v433 = vld [vmem:[%s3 + $0x38] sm:$0xf]
      %v434 = vld [vmem:[%s3 + $0x3c] sm:$0xf]
      %v435 = vld [vmem:[%s4] sm:$0x1]
      %v437 = vperm.slane %v435, 0
      %v455 = vunpack.c.l.b16 %v419
      %v456 = vunpack.c.l.b16 %v420
      %v457 = vunpack.c.l.b16 %v421
      %v458 = vunpack.c.l.b16 %v422
      %v459 = vunpack.c.l.b16 %v423
      %v460 = vunpack.c.l.b16 %v424
      %v461 = vunpack.c.l.b16 %v425
      %v462 = vunpack.c.l.b16 %v426
      %v463 = vunpack.c.l.b16 %v427
      %v464 = vunpack.c.l.b16 %v428
      %v465 = vunpack.c.l.b16 %v429
      %v466 = vunpack.c.l.b16 %v430
      %v467 = vunpack.c.l.b16 %v431
      %v468 = vunpack.c.l.b16 %v432
      %v469 = vunpack.c.l.b16 %v433
      %v470 = vunpack.c.l.b16 %v434
      %v471 = vpack.c.b16 %v456, %v455
      %v472 = vpack.c.b16 %v458, %v457
      %v473 = vpack.c.b16 %v460, %v459
      %v474 = vpack.c.b16 %v462, %v461
      %v475 = vpack.c.b16 %v464, %v463
      %v476 = vpack.c.b16 %v466, %v465
      %v477 = vpack.c.b16 %v468, %v467
      %v478 = vpack.c.b16 %v470, %v469
      %487 = vmatpush.bf16.msra.mxu0 %v478
      %488 = vmatpush.bf16.msra.mxu0 %v477
      %489 = vmatpush.bf16.msra.mxu0 %v476
      %490 = vmatpush.bf16.msra.mxu0 %v475
      %491 = vmatpush.bf16.msra.mxu0 %v474
      %492 = vmatpush.bf16.msra.mxu0 %v473
      %493 = vmatpush.bf16.msra.mxu0 %v472
      %494 = vmatpush.bf16.msra.mxu0 %v471
      %495 = vmatmul.bf16.gmra.mxu0 %v418
      %v496 = vpop.f32.mrf.mxu0
      %v497 = vadd.f32 %v437, %v496
      %v498 = vpop.f32.mrf.mxu0
      %v499 = vadd.f32 %v437, %v498
      %500 = vdwg.mxu0
      %v501 = vlaneseq
      %v502 = vand.u32 %v501, 127
      %v503 = vsub.f32 0.0, %v497
      %v504 = vsub.f32 0.0, %v499
      %v505 = vmul.f32 %v503, 1.442695
      %v506 = vpow.pop %v505
      %v507 = vmul.f32 %v504, 1.442695
      %v508 = vpow.pop %v507
      %v509 = vadd.f32 %v506, 1.0
      %v510 = vadd.f32 %v508, 1.0
      %v511 = vrcp.pop %v509
      %v512 = vrcp.pop %v510
      %vm513 = vcmp.ge.s32.totalorder %v502, 4
      %vm514 = vcmp.lt.s32.totalorder %v502, 12
      %vm515 = vmand %vm513, %vm514
      %v516 = vsel %vm515, %v497, -1e+30
      %v517 = vsel %vm515, %v499, -1e+30
      %518 = vmax.xlane.f32.xlu0 %v516
      %v519 = vpop.xlane.xlu0 %518
      %520 = vmax.xlane.f32.xlu0 %v517
      %v521 = vpop.xlane.xlu0 %520
      %v522 = vsub.f32 %v516, %v519
      %v523 = vsub.f32 %v517, %v521
      %v524 = vmul.f32 %v522, 1.442695
      %v525 = vpow.pop %v524
      %v526 = vmul.f32 %v523, 1.442695
      %v527 = vpow.pop %v526
      %v528 = vsel %vm515, %v525, 0.0
      %v529 = vsel %vm515, %v527, 0.0
      %530 = vadd.xlane.f32.xlu0 %v528
      %v531 = vpop.xlane.xlu0 %530
      %532 = vadd.xlane.f32.xlu0 %v529
      %v533 = vpop.xlane.xlu0 %532
      %v534 = vrcp.pop %v531
      %v535 = vrcp.pop %v533
      %v536 = vmul.f32 %v528, %v534
      %v537 = vmul.f32 %v529, %v535
      %vm538 = vcmp.lt.s32.totalorder %v502, 4
      %v539 = vsel %vm538, %v511, %v536
      %v540 = vsel %vm538, %v512, %v537
      %541 = vst [vmem:[%s224] sm:$0xff] %v539
      %542 = vst [vmem:[%s224 + $0x8] sm:$0xff] %v540
      %p543 = scmp.lt.s32.totalorder %s16, 1
      %s544 = scalar_select %p543, %s16, 1
      %s545 = smul.addr %s544, 2
      %s546 = smul.addr %s545, 8
      %s547 = scalar_lea.vmem %s5, %s546
      // Predicated region
      $region41: #{detr_forward.3} parent=39 // pred_check
        %p548 = pneg %p144
      $region42: #{detr_forward.3} parent=39 // pred_check_branch
        %550 = sbr.rel (%p548) target = $region44
      $region43: #{detr_forward.3} parent=39 // pred_region
        _
      $region44: #{detr_forward.3} parent=39 // pred_fallthru
        _
    $region40: #{detr_forward.3} parent=5 // pred_fallthru
      _
    %p551 = scmp.le.s32.totalorder 2, %s11
    // Predicated region
    $region45: #{detr_forward.3} parent=5 // pred_check
      %p552 = pneg %p551
    $region46: #{detr_forward.3} parent=5 // pred_check_branch
      %554 = sbr.rel (%p552) target = $region48
    $region47: #{detr_forward.3} parent=5 // pred_region
      %s555 = ssub.s32 %s11, 2
      // Predicated region
      $region49: #{detr_forward.3} parent=47 // pred_check
        %p556 = pneg %p150
      $region50: #{detr_forward.3} parent=47 // pred_check_branch
        %558 = sbr.rel (%p556) target = $region52
      $region51: #{detr_forward.3} parent=47 // pred_region
        %p559 = scmp.lt.s32.totalorder %s17, 1
        %s560 = scalar_select %p559, %s17, 1
        %s561 = smul.addr %s560, 2
        %s562 = smul.addr %s561, 8
        %s563 = scalar_lea.vmem %s5, %s562
      $region52: #{detr_forward.3} parent=47 // pred_fallthru
        _
    $region48: #{detr_forward.3} parent=5 // pred_fallthru
      _
  $region6: #{detr_forward.3} parent=0 // loop_footer
    %s15 = sadd.s32 1, %s11
  $region7: #{detr_forward.3} parent=0 // loop_footer_branch
    %10 = sbr.rel target = $region3
  $region8: #{detr_forward.3} parent=0 // loop_exit
    _

</llo_original>
